<compile_context>
chip_gen: v5e
topology: v5e:2x2
jax: 0.10.0
libtpu: 0.0.40
codegen_flags: <defaults>
</compile_context>

<pallas_src>
import functools
import math

import jax
import jax.numpy as jnp
import numpy as np
from jax.experimental import pallas as pl
from jax.experimental.pallas import tpu as pltpu


def encoder_kernel(x_ref, bias_ref, wqkvo_ref, w1_ref, w2_ref, vecd_ref, b1_ref,
                   o_ref, *, num_layers, num_heads):
    B, S, D = x_ref.shape
    dk = D // num_heads
    scale = 1.0 / math.sqrt(dk)

    # ---- load shared (clone()-identical) parameters once ----
    bias = bias_ref[...]                         # (B,S,S) additive mask bias
    wq = wqkvo_ref[:, 0 * D:1 * D]
    wk = wqkvo_ref[:, 1 * D:2 * D]
    wv = wqkvo_ref[:, 2 * D:3 * D]
    wo = wqkvo_ref[:, 3 * D:4 * D]
    w1 = w1_ref[...]
    w2 = w2_ref[...]
    bq, bk, bv, bo = (vecd_ref[i:i + 1, :] for i in range(4))
    ln1_g, ln1_b, ln2_g, ln2_b = (vecd_ref[i:i + 1, :] for i in range(4, 8))
    b2 = vecd_ref[8:9, :]
    b1 = b1_ref[...]

    def layer_norm(v, g, b):
        mu = jnp.mean(v, axis=-1, keepdims=True)
        var = jnp.mean((v - mu) ** 2, axis=-1, keepdims=True)
        return (v - mu) * jax.lax.rsqrt(var + 1e-5) * g + b

    x = x_ref[...]                               # (B,S,D); stays on-chip for all layers

    for _ in range(num_layers):                  # clone(): every layer shares these params
        # ---- sublayer 1: x + SelfAttn(LayerNorm(x)) ----  (dropout = eval identity)
        xf = x.reshape(B * S, D)                 # fold batch into rows for the matmuls
        xn = layer_norm(xf, ln1_g, ln1_b)
        q = (jnp.dot(xn, wq, preferred_element_type=jnp.float32) + bq).reshape(B, S, D)
        k = (jnp.dot(xn, wk, preferred_element_type=jnp.float32) + bk).reshape(B, S, D)
        v = (jnp.dot(xn, wv, preferred_element_type=jnp.float32) + bv).reshape(B, S, D)

        attn = jnp.zeros((B * S, D), jnp.float32)
        for h in range(num_heads):               # static unroll; each head batched over B
            lo, hi = h * dk, (h + 1) * dk
            s = jnp.einsum('bqd,bkd->bqk', q[:, :, lo:hi], k[:, :, lo:hi],
                           preferred_element_type=jnp.float32) * scale + bias
            s = s - jnp.max(s, axis=-1, keepdims=True)
            p = jnp.exp(s)
            p = p * pl.reciprocal(jnp.sum(p, axis=-1, keepdims=True), approx=True)
            oh = jnp.einsum('bqk,bkd->bqd', p, v[:, :, lo:hi],
                            preferred_element_type=jnp.float32)      # (B,S,dk)
            # concat(heads) @ Wo == sum_h head_h @ Wo[rows of head h]  (no lane concat)
            attn = attn + jnp.dot(oh.reshape(B * S, dk), wo[lo:hi, :],
                                  preferred_element_type=jnp.float32)
        x = x + (attn + bo).reshape(B, S, D)

        # ---- sublayer 2: x + FFN(LayerNorm(x)) ----
        xf = x.reshape(B * S, D)
        xn2 = layer_norm(xf, ln2_g, ln2_b)
        h1 = jnp.maximum(jnp.dot(xn2, w1, preferred_element_type=jnp.float32) + b1, 0.0)
        ff = jnp.dot(h1, w2, preferred_element_type=jnp.float32) + b2
        x = x + ff.reshape(B, S, D)

    o_ref[...] = x


def encoder_forward(x, mask, params, num_layers, num_heads):
    (wq, bq, wk, bk, wv, bv, wo, bo,
     ln1_g, ln1_b, ln2_g, ln2_b, w1, b1, w2, b2) = params
    B, S, D = x.shape

    # pack parameters into a few contiguous slabs (fewer DMAs / VMEM buffers)
    w_qkvo = jnp.concatenate([wq, wk, wv, wo], axis=1)                       # (D, 4D)
    vec_d = jnp.concatenate([bq, bk, bv, bo, ln1_g, ln1_b, ln2_g, ln2_b, b2], axis=0)  # (9, D)
    # additive attention bias: 0 where attend, -1e9 where masked
    attn_bias = (mask.astype(jnp.float32) - 1.0) * 1e9                        # (B, S, S)

    kernel = functools.partial(encoder_kernel,
                               num_layers=num_layers, num_heads=num_heads)

    def full(shape):
        n = len(shape)
        return pl.BlockSpec(shape, lambda i, _n=n: (0,) * _n)

    return pl.pallas_call(
        kernel,
        grid=(1,),                                # whole problem fits one step (<100 KB)
        in_specs=[full(x.shape), full(attn_bias.shape), full(w_qkvo.shape),
                  full(w1.shape), full(w2.shape), full(vec_d.shape), full(b1.shape)],
        out_specs=full((B, S, D)),
        out_shape=jax.ShapeDtypeStruct((B, S, D), jnp.float32),
        compiler_params=pltpu.CompilerParams(dimension_semantics=("arbitrary",)),
    )(x, attn_bias, w_qkvo, w1, w2, vec_d, b1)
    # TODO(synk): for realistic S (>=1k) tile attention over keys (flash-style)
    # instead of keeping full (S,S) score/mask tiles resident (v7x VMEM = 64 MiB).


# ---------------- pure-JAX reference (for correctness check) ----------------
def encoder_forward_ref(x, mask, p, num_layers, num_heads):
    (wq, bq, wk, bk, wv, bv, wo, bo,
     ln1_g, ln1_b, ln2_g, ln2_b, w1, b1, w2, b2) = p
    D = x.shape[-1]
    dk = D // num_heads

    def ln(v, g, b):
        mu = jnp.mean(v, -1, keepdims=True)
        var = jnp.mean((v - mu) ** 2, -1, keepdims=True)
        return (v - mu) / jnp.sqrt(var + 1e-5) * g + b

    for _ in range(num_layers):
        xn = ln(x, ln1_g, ln1_b)
        q = xn @ wq + bq
        k = xn @ wk + bk
        v = xn @ wv + bv
        outs = []
        for h in range(num_heads):
            qh, kh, vh = (t[..., h * dk:(h + 1) * dk] for t in (q, k, v))
            s = jnp.einsum("bqd,bkd->bqk", qh, kh) / math.sqrt(dk)
            s = jnp.where(mask == 0, -1e9, s)
            p_ = jax.nn.softmax(s, axis=-1)
            outs.append(jnp.einsum("bqk,bkd->bqd", p_, vh))
        attn = jnp.concatenate(outs, axis=-1) @ wo + bo
        x = x + attn
        xn2 = ln(x, ln2_g, ln2_b)
        x = x + (jnp.maximum(xn2 @ w1 + b1, 0.0) @ w2 + b2)
    return x


if __name__ == "__main__":
    B, S, D, H, DFF, N = 2, 8, 32, 4, 64, 2

    key = jax.random.PRNGKey(0)
    ks = jax.random.split(key, 10)

    def init(k, shape, scale=0.02):
        return (scale * jax.random.normal(k, shape)).astype(jnp.float32)

    # parameters (weights stored as (in, out) so kernel does x @ W + b)
    wq = init(ks[0], (D, D)); bq = jnp.zeros((1, D), jnp.float32)
    wk = init(ks[1], (D, D)); bk = jnp.zeros((1, D), jnp.float32)
    wv = init(ks[2], (D, D)); bv = jnp.zeros((1, D), jnp.float32)
    wo = init(ks[3], (D, D)); bo = jnp.zeros((1, D), jnp.float32)
    ln1_g = jnp.ones((1, D), jnp.float32); ln1_b = jnp.zeros((1, D), jnp.float32)
    ln2_g = jnp.ones((1, D), jnp.float32); ln2_b = jnp.zeros((1, D), jnp.float32)
    w1 = init(ks[4], (D, DFF)); b1 = jnp.zeros((1, DFF), jnp.float32)
    w2 = init(ks[5], (DFF, D)); b2 = jnp.zeros((1, D), jnp.float32)

    params = [wq, bq, wk, bk, wv, bv, wo, bo,
              ln1_g, ln1_b, ln2_g, ln2_b, w1, b1, w2, b2]

    x = jax.random.normal(ks[6], (B, S, D), dtype=jnp.float32)
    # simple padding-style mask: last token of batch 1 is masked out
    mask = jnp.ones((B, S, S), dtype=jnp.float32)
    mask = mask.at[1, :, -1].set(0.0)

    out = encoder_forward(x, mask, params, num_layers=N, num_heads=H)
    out = jax.block_until_ready(out)

    ref = encoder_forward_ref(x, mask, params, num_layers=N, num_heads=H)
    np.testing.assert_allclose(np.asarray(out), np.asarray(ref), rtol=1e-4, atol=1e-4)

    print("KERNEL_OK")
</pallas_src>

<mosaic_0001>
module attributes {stable_mosaic.version = 11 : i64} {
  func.func @encoder_kernel(%arg0: i32, %arg1: memref<2x8x32xf32, #tpu.memory_space<vmem>>, %arg2: memref<2x8x8xf32, #tpu.memory_space<vmem>>, %arg3: memref<32x128xf32, #tpu.memory_space<vmem>>, %arg4: memref<32x64xf32, #tpu.memory_space<vmem>>, %arg5: memref<64x32xf32, #tpu.memory_space<vmem>>, %arg6: memref<9x32xf32, #tpu.memory_space<vmem>>, %arg7: memref<1x64xf32, #tpu.memory_space<vmem>>, %arg8: memref<2x8x32xf32, #tpu.memory_space<vmem>>) attributes {dimension_semantics = [#tpu.dimension_semantics<arbitrary>], iteration_bounds = array<i64: 1>, scalar_prefetch = 0 : i64, scratch_operands = 0 : i64, tpu.core_type = #tpu.core_type<tc>, window_params = [{pipeline_mode = #tpu.pipeline_mode<synchronous>, transform_indices = @transform_0, window_bounds = array<i64: 2, 8, 32>}, {pipeline_mode = #tpu.pipeline_mode<synchronous>, transform_indices = @transform_1, window_bounds = array<i64: 2, 8, 8>}, {pipeline_mode = #tpu.pipeline_mode<synchronous>, transform_indices = @transform_2, window_bounds = array<i64: 32, 128>}, {pipeline_mode = #tpu.pipeline_mode<synchronous>, transform_indices = @transform_3, window_bounds = array<i64: 32, 64>}, {pipeline_mode = #tpu.pipeline_mode<synchronous>, transform_indices = @transform_4, window_bounds = array<i64: 64, 32>}, {pipeline_mode = #tpu.pipeline_mode<synchronous>, transform_indices = @transform_5, window_bounds = array<i64: 9, 32>}, {pipeline_mode = #tpu.pipeline_mode<synchronous>, transform_indices = @transform_6, window_bounds = array<i64: 1, 64>}, {pipeline_mode = #tpu.pipeline_mode<synchronous>, transform_indices = @transform_7, window_bounds = array<i64: 2, 8, 32>}]} {
    %c0 = arith.constant 0 : index
    %c0_0 = arith.constant 0 : index
    %c0_1 = arith.constant 0 : index
    %0 = vector.load %arg2[%c0, %c0_0, %c0_1] : memref<2x8x8xf32, #tpu.memory_space<vmem>>, vector<2x8x8xf32>
    %c0_2 = arith.constant 0 : index
    %c0_3 = arith.constant 0 : index
    %1 = vector.load %arg3[%c0_2, %c0_3] : memref<32x128xf32, #tpu.memory_space<vmem>>, vector<32x32xf32>
    %c0_4 = arith.constant 0 : index
    %c32 = arith.constant 32 : index
    %2 = vector.load %arg3[%c0_4, %c32] : memref<32x128xf32, #tpu.memory_space<vmem>>, vector<32x32xf32>
    %c0_5 = arith.constant 0 : index
    %c64 = arith.constant 64 : index
    %3 = vector.load %arg3[%c0_5, %c64] : memref<32x128xf32, #tpu.memory_space<vmem>>, vector<32x32xf32>
    %c0_6 = arith.constant 0 : index
    %c96 = arith.constant 96 : index
    %4 = vector.load %arg3[%c0_6, %c96] : memref<32x128xf32, #tpu.memory_space<vmem>>, vector<32x32xf32>
    %c0_7 = arith.constant 0 : index
    %c0_8 = arith.constant 0 : index
    %5 = vector.load %arg4[%c0_7, %c0_8] : memref<32x64xf32, #tpu.memory_space<vmem>>, vector<32x64xf32>
    %c0_9 = arith.constant 0 : index
    %c0_10 = arith.constant 0 : index
    %6 = vector.load %arg5[%c0_9, %c0_10] : memref<64x32xf32, #tpu.memory_space<vmem>>, vector<64x32xf32>
    %c0_11 = arith.constant 0 : index
    %c0_12 = arith.constant 0 : index
    %7 = vector.load %arg6[%c0_11, %c0_12] : memref<9x32xf32, #tpu.memory_space<vmem>>, vector<1x32xf32>
    %c1 = arith.constant 1 : index
    %c0_13 = arith.constant 0 : index
    %8 = vector.load %arg6[%c1, %c0_13] : memref<9x32xf32, #tpu.memory_space<vmem>>, vector<1x32xf32>
    %c2 = arith.constant 2 : index
    %c0_14 = arith.constant 0 : index
    %9 = vector.load %arg6[%c2, %c0_14] : memref<9x32xf32, #tpu.memory_space<vmem>>, vector<1x32xf32>
    %c3 = arith.constant 3 : index
    %c0_15 = arith.constant 0 : index
    %10 = vector.load %arg6[%c3, %c0_15] : memref<9x32xf32, #tpu.memory_space<vmem>>, vector<1x32xf32>
    %c4 = arith.constant 4 : index
    %c0_16 = arith.constant 0 : index
    %11 = vector.load %arg6[%c4, %c0_16] : memref<9x32xf32, #tpu.memory_space<vmem>>, vector<1x32xf32>
    %c5 = arith.constant 5 : index
    %c0_17 = arith.constant 0 : index
    %12 = vector.load %arg6[%c5, %c0_17] : memref<9x32xf32, #tpu.memory_space<vmem>>, vector<1x32xf32>
    %c6 = arith.constant 6 : index
    %c0_18 = arith.constant 0 : index
    %13 = vector.load %arg6[%c6, %c0_18] : memref<9x32xf32, #tpu.memory_space<vmem>>, vector<1x32xf32>
    %c7 = arith.constant 7 : index
    %c0_19 = arith.constant 0 : index
    %14 = vector.load %arg6[%c7, %c0_19] : memref<9x32xf32, #tpu.memory_space<vmem>>, vector<1x32xf32>
    %c8 = arith.constant 8 : index
    %c0_20 = arith.constant 0 : index
    %15 = vector.load %arg6[%c8, %c0_20] : memref<9x32xf32, #tpu.memory_space<vmem>>, vector<1x32xf32>
    %c0_21 = arith.constant 0 : index
    %c0_22 = arith.constant 0 : index
    %16 = vector.load %arg7[%c0_21, %c0_22] : memref<1x64xf32, #tpu.memory_space<vmem>>, vector<1x64xf32>
    %c0_23 = arith.constant 0 : index
    %c0_24 = arith.constant 0 : index
    %c0_25 = arith.constant 0 : index
    %17 = vector.load %arg1[%c0_23, %c0_24, %c0_25] : memref<2x8x32xf32, #tpu.memory_space<vmem>>, vector<2x8x32xf32>
    %18 = vector.shape_cast %17 : vector<2x8x32xf32> to vector<16x32xf32>
    %cst = arith.constant dense<0.000000e+00> : vector<16xf32>
    %19 = vector.multi_reduction <add>, %18, %cst [1] : vector<16x32xf32> to vector<16xf32>
    %20 = vector.shape_cast %19 : vector<16xf32> to vector<16x1xf32>
    %cst_26 = arith.constant 3.200000e+01 : f32
    %21 = vector.broadcast %cst_26 : f32 to vector<16x1xf32>
    %22 = arith.divf %20, %21 : vector<16x1xf32>
    %23 = vector.broadcast %22 : vector<16x1xf32> to vector<16x32xf32>
    %24 = arith.subf %18, %23 : vector<16x32xf32>
    %25 = arith.mulf %24, %24 : vector<16x32xf32>
    %cst_27 = arith.constant dense<0.000000e+00> : vector<16xf32>
    %26 = vector.multi_reduction <add>, %25, %cst_27 [1] : vector<16x32xf32> to vector<16xf32>
    %27 = vector.shape_cast %26 : vector<16xf32> to vector<16x1xf32>
    %cst_28 = arith.constant 3.200000e+01 : f32
    %28 = vector.broadcast %cst_28 : f32 to vector<16x1xf32>
    %29 = arith.divf %27, %28 : vector<16x1xf32>
    %30 = vector.broadcast %22 : vector<16x1xf32> to vector<16x32xf32>
    %31 = arith.subf %18, %30 : vector<16x32xf32>
    %cst_29 = arith.constant 9.99999974E-6 : f32
    %32 = vector.broadcast %cst_29 : f32 to vector<16x1xf32>
    %33 = arith.addf %29, %32 : vector<16x1xf32>
    %34 = math.rsqrt %33 : vector<16x1xf32>
    %35 = vector.broadcast %34 : vector<16x1xf32> to vector<16x32xf32>
    %36 = arith.mulf %31, %35 : vector<16x32xf32>
    %37 = vector.broadcast %11 : vector<1x32xf32> to vector<16x32xf32>
    %38 = arith.mulf %36, %37 : vector<16x32xf32>
    %39 = vector.broadcast %12 : vector<1x32xf32> to vector<16x32xf32>
    %40 = arith.addf %38, %39 : vector<16x32xf32>
    %cst_30 = arith.constant dense<0.000000e+00> : vector<16x32xf32>
    %41 = tpu.matmul %40, %1, %cst_30 {dimension_numbers = #tpu.dot_dimension_numbers<[1], [0], [0], [1], [0, 0, 1, 1], [], []>} : vector<16x32xf32>, vector<32x32xf32>, vector<16x32xf32> -> vector<16x32xf32>
    %42 = vector.broadcast %7 : vector<1x32xf32> to vector<16x32xf32>
    %43 = arith.addf %41, %42 : vector<16x32xf32>
    %44 = vector.shape_cast %43 : vector<16x32xf32> to vector<2x8x32xf32>
    %cst_31 = arith.constant dense<0.000000e+00> : vector<16x32xf32>
    %45 = tpu.matmul %40, %2, %cst_31 {dimension_numbers = #tpu.dot_dimension_numbers<[1], [0], [0], [1], [0, 0, 1, 1], [], []>} : vector<16x32xf32>, vector<32x32xf32>, vector<16x32xf32> -> vector<16x32xf32>
    %46 = vector.broadcast %8 : vector<1x32xf32> to vector<16x32xf32>
    %47 = arith.addf %45, %46 : vector<16x32xf32>
    %48 = vector.shape_cast %47 : vector<16x32xf32> to vector<2x8x32xf32>
    %cst_32 = arith.constant dense<0.000000e+00> : vector<16x32xf32>
    %49 = tpu.matmul %40, %3, %cst_32 {dimension_numbers = #tpu.dot_dimension_numbers<[1], [0], [0], [1], [0, 0, 1, 1], [], []>} : vector<16x32xf32>, vector<32x32xf32>, vector<16x32xf32> -> vector<16x32xf32>
    %50 = vector.broadcast %9 : vector<1x32xf32> to vector<16x32xf32>
    %51 = arith.addf %49, %50 : vector<16x32xf32>
    %52 = vector.shape_cast %51 : vector<16x32xf32> to vector<2x8x32xf32>
    %cst_33 = arith.constant 0.000000e+00 : f32
    %53 = vector.broadcast %cst_33 : f32 to vector<16x32xf32>
    %54 = vector.extract_strided_slice %44 {offsets = [0, 0, 0], sizes = [2, 8, 8], strides = [1, 1, 1]} : vector<2x8x32xf32> to vector<2x8x8xf32>
    %55 = vector.extract_strided_slice %48 {offsets = [0, 0, 0], sizes = [2, 8, 8], strides = [1, 1, 1]} : vector<2x8x32xf32> to vector<2x8x8xf32>
    "tpu.trace_start"() <{level = 10 : i32, message = "bqd,bkd->bqk"}> : () -> ()
    %cst_34 = arith.constant dense<0.000000e+00> : vector<2x8x8xf32>
    %56 = tpu.matmul %54, %55, %cst_34 {dimension_numbers = #tpu.dot_dimension_numbers<[2], [2], [1], [1], [0, 0, 0, 1, 1, 1], [0], [0]>} : vector<2x8x8xf32>, vector<2x8x8xf32>, vector<2x8x8xf32> -> vector<2x8x8xf32>
    "tpu.trace_stop"() : () -> ()
    %cst_35 = arith.constant 0.353553385 : f32
    %57 = vector.broadcast %cst_35 : f32 to vector<2x8x8xf32>
    %58 = arith.mulf %56, %57 : vector<2x8x8xf32>
    %59 = arith.addf %58, %0 : vector<2x8x8xf32>
    %cst_36 = arith.constant dense<0xFF800000> : vector<2x8xf32>
    %60 = vector.multi_reduction <maximumf>, %59, %cst_36 [2] : vector<2x8x8xf32> to vector<2x8xf32>
    %61 = vector.shape_cast %60 : vector<2x8xf32> to vector<2x8x1xf32>
    %62 = vector.broadcast %61 : vector<2x8x1xf32> to vector<2x8x8xf32>
    %63 = arith.subf %59, %62 : vector<2x8x8xf32>
    %64 = math.exp %63 : vector<2x8x8xf32>
    %cst_37 = arith.constant dense<0.000000e+00> : vector<2x8xf32>
    %65 = vector.multi_reduction <add>, %64, %cst_37 [2] : vector<2x8x8xf32> to vector<2x8xf32>
    %66 = vector.shape_cast %65 : vector<2x8xf32> to vector<2x8x1xf32>
    %67 = tpu.reciprocal %66 {approx = true} : vector<2x8x1xf32> -> vector<2x8x1xf32>
    %68 = vector.broadcast %67 : vector<2x8x1xf32> to vector<2x8x8xf32>
    %69 = arith.mulf %64, %68 : vector<2x8x8xf32>
    %70 = vector.extract_strided_slice %52 {offsets = [0, 0, 0], sizes = [2, 8, 8], strides = [1, 1, 1]} : vector<2x8x32xf32> to vector<2x8x8xf32>
    "tpu.trace_start"() <{level = 10 : i32, message = "bqk,bkd->bqd"}> : () -> ()
    %cst_38 = arith.constant dense<0.000000e+00> : vector<2x8x8xf32>
    %71 = tpu.matmul %69, %70, %cst_38 {dimension_numbers = #tpu.dot_dimension_numbers<[2], [1], [1], [2], [0, 0, 0, 1, 1, 2], [0], [0]>} : vector<2x8x8xf32>, vector<2x8x8xf32>, vector<2x8x8xf32> -> vector<2x8x8xf32>
    "tpu.trace_stop"() : () -> ()
    %72 = vector.shape_cast %71 : vector<2x8x8xf32> to vector<16x8xf32>
    %73 = vector.extract_strided_slice %4 {offsets = [0, 0], sizes = [8, 32], strides = [1, 1]} : vector<32x32xf32> to vector<8x32xf32>
    %cst_39 = arith.constant dense<0.000000e+00> : vector<16x32xf32>
    %74 = tpu.matmul %72, %73, %cst_39 {dimension_numbers = #tpu.dot_dimension_numbers<[1], [0], [0], [1], [0, 0, 1, 1], [], []>} : vector<16x8xf32>, vector<8x32xf32>, vector<16x32xf32> -> vector<16x32xf32>
    %75 = arith.addf %53, %74 : vector<16x32xf32>
    %76 = vector.extract_strided_slice %44 {offsets = [0, 0, 8], sizes = [2, 8, 8], strides = [1, 1, 1]} : vector<2x8x32xf32> to vector<2x8x8xf32>
    %77 = vector.extract_strided_slice %48 {offsets = [0, 0, 8], sizes = [2, 8, 8], strides = [1, 1, 1]} : vector<2x8x32xf32> to vector<2x8x8xf32>
    "tpu.trace_start"() <{level = 10 : i32, message = "bqd,bkd->bqk"}> : () -> ()
    %cst_40 = arith.constant dense<0.000000e+00> : vector<2x8x8xf32>
    %78 = tpu.matmul %76, %77, %cst_40 {dimension_numbers = #tpu.dot_dimension_numbers<[2], [2], [1], [1], [0, 0, 0, 1, 1, 1], [0], [0]>} : vector<2x8x8xf32>, vector<2x8x8xf32>, vector<2x8x8xf32> -> vector<2x8x8xf32>
    "tpu.trace_stop"() : () -> ()
    %cst_41 = arith.constant 0.353553385 : f32
    %79 = vector.broadcast %cst_41 : f32 to vector<2x8x8xf32>
    %80 = arith.mulf %78, %79 : vector<2x8x8xf32>
    %81 = arith.addf %80, %0 : vector<2x8x8xf32>
    %cst_42 = arith.constant dense<0xFF800000> : vector<2x8xf32>
    %82 = vector.multi_reduction <maximumf>, %81, %cst_42 [2] : vector<2x8x8xf32> to vector<2x8xf32>
    %83 = vector.shape_cast %82 : vector<2x8xf32> to vector<2x8x1xf32>
    %84 = vector.broadcast %83 : vector<2x8x1xf32> to vector<2x8x8xf32>
    %85 = arith.subf %81, %84 : vector<2x8x8xf32>
    %86 = math.exp %85 : vector<2x8x8xf32>
    %cst_43 = arith.constant dense<0.000000e+00> : vector<2x8xf32>
    %87 = vector.multi_reduction <add>, %86, %cst_43 [2] : vector<2x8x8xf32> to vector<2x8xf32>
    %88 = vector.shape_cast %87 : vector<2x8xf32> to vector<2x8x1xf32>
    %89 = tpu.reciprocal %88 {approx = true} : vector<2x8x1xf32> -> vector<2x8x1xf32>
    %90 = vector.broadcast %89 : vector<2x8x1xf32> to vector<2x8x8xf32>
    %91 = arith.mulf %86, %90 : vector<2x8x8xf32>
    %92 = vector.extract_strided_slice %52 {offsets = [0, 0, 8], sizes = [2, 8, 8], strides = [1, 1, 1]} : vector<2x8x32xf32> to vector<2x8x8xf32>
    "tpu.trace_start"() <{level = 10 : i32, message = "bqk,bkd->bqd"}> : () -> ()
    %cst_44 = arith.constant dense<0.000000e+00> : vector<2x8x8xf32>
    %93 = tpu.matmul %91, %92, %cst_44 {dimension_numbers = #tpu.dot_dimension_numbers<[2], [1], [1], [2], [0, 0, 0, 1, 1, 2], [0], [0]>} : vector<2x8x8xf32>, vector<2x8x8xf32>, vector<2x8x8xf32> -> vector<2x8x8xf32>
    "tpu.trace_stop"() : () -> ()
    %94 = vector.shape_cast %93 : vector<2x8x8xf32> to vector<16x8xf32>
    %95 = vector.extract_strided_slice %4 {offsets = [8, 0], sizes = [8, 32], strides = [1, 1]} : vector<32x32xf32> to vector<8x32xf32>
    %cst_45 = arith.constant dense<0.000000e+00> : vector<16x32xf32>
    %96 = tpu.matmul %94, %95, %cst_45 {dimension_numbers = #tpu.dot_dimension_numbers<[1], [0], [0], [1], [0, 0, 1, 1], [], []>} : vector<16x8xf32>, vector<8x32xf32>, vector<16x32xf32> -> vector<16x32xf32>
    %97 = arith.addf %75, %96 : vector<16x32xf32>
    %98 = vector.extract_strided_slice %44 {offsets = [0, 0, 16], sizes = [2, 8, 8], strides = [1, 1, 1]} : vector<2x8x32xf32> to vector<2x8x8xf32>
    %99 = vector.extract_strided_slice %48 {offsets = [0, 0, 16], sizes = [2, 8, 8], strides = [1, 1, 1]} : vector<2x8x32xf32> to vector<2x8x8xf32>
    "tpu.trace_start"() <{level = 10 : i32, message = "bqd,bkd->bqk"}> : () -> ()
    %cst_46 = arith.constant dense<0.000000e+00> : vector<2x8x8xf32>
    %100 = tpu.matmul %98, %99, %cst_46 {dimension_numbers = #tpu.dot_dimension_numbers<[2], [2], [1], [1], [0, 0, 0, 1, 1, 1], [0], [0]>} : vector<2x8x8xf32>, vector<2x8x8xf32>, vector<2x8x8xf32> -> vector<2x8x8xf32>
    "tpu.trace_stop"() : () -> ()
    %cst_47 = arith.constant 0.353553385 : f32
    %101 = vector.broadcast %cst_47 : f32 to vector<2x8x8xf32>
    %102 = arith.mulf %100, %101 : vector<2x8x8xf32>
    %103 = arith.addf %102, %0 : vector<2x8x8xf32>
    %cst_48 = arith.constant dense<0xFF800000> : vector<2x8xf32>
    %104 = vector.multi_reduction <maximumf>, %103, %cst_48 [2] : vector<2x8x8xf32> to vector<2x8xf32>
    %105 = vector.shape_cast %104 : vector<2x8xf32> to vector<2x8x1xf32>
    %106 = vector.broadcast %105 : vector<2x8x1xf32> to vector<2x8x8xf32>
    %107 = arith.subf %103, %106 : vector<2x8x8xf32>
    %108 = math.exp %107 : vector<2x8x8xf32>
    %cst_49 = arith.constant dense<0.000000e+00> : vector<2x8xf32>
    %109 = vector.multi_reduction <add>, %108, %cst_49 [2] : vector<2x8x8xf32> to vector<2x8xf32>
    %110 = vector.shape_cast %109 : vector<2x8xf32> to vector<2x8x1xf32>
    %111 = tpu.reciprocal %110 {approx = true} : vector<2x8x1xf32> -> vector<2x8x1xf32>
    %112 = vector.broadcast %111 : vector<2x8x1xf32> to vector<2x8x8xf32>
    %113 = arith.mulf %108, %112 : vector<2x8x8xf32>
    %114 = vector.extract_strided_slice %52 {offsets = [0, 0, 16], sizes = [2, 8, 8], strides = [1, 1, 1]} : vector<2x8x32xf32> to vector<2x8x8xf32>
    "tpu.trace_start"() <{level = 10 : i32, message = "bqk,bkd->bqd"}> : () -> ()
    %cst_50 = arith.constant dense<0.000000e+00> : vector<2x8x8xf32>
    %115 = tpu.matmul %113, %114, %cst_50 {dimension_numbers = #tpu.dot_dimension_numbers<[2], [1], [1], [2], [0, 0, 0, 1, 1, 2], [0], [0]>} : vector<2x8x8xf32>, vector<2x8x8xf32>, vector<2x8x8xf32> -> vector<2x8x8xf32>
    "tpu.trace_stop"() : () -> ()
    %116 = vector.shape_cast %115 : vector<2x8x8xf32> to vector<16x8xf32>
    %117 = vector.extract_strided_slice %4 {offsets = [16, 0], sizes = [8, 32], strides = [1, 1]} : vector<32x32xf32> to vector<8x32xf32>
    %cst_51 = arith.constant dense<0.000000e+00> : vector<16x32xf32>
    %118 = tpu.matmul %116, %117, %cst_51 {dimension_numbers = #tpu.dot_dimension_numbers<[1], [0], [0], [1], [0, 0, 1, 1], [], []>} : vector<16x8xf32>, vector<8x32xf32>, vector<16x32xf32> -> vector<16x32xf32>
    %119 = arith.addf %97, %118 : vector<16x32xf32>
    %120 = vector.extract_strided_slice %44 {offsets = [0, 0, 24], sizes = [2, 8, 8], strides = [1, 1, 1]} : vector<2x8x32xf32> to vector<2x8x8xf32>
    %121 = vector.extract_strided_slice %48 {offsets = [0, 0, 24], sizes = [2, 8, 8], strides = [1, 1, 1]} : vector<2x8x32xf32> to vector<2x8x8xf32>
    "tpu.trace_start"() <{level = 10 : i32, message = "bqd,bkd->bqk"}> : () -> ()
    %cst_52 = arith.constant dense<0.000000e+00> : vector<2x8x8xf32>
    %122 = tpu.matmul %120, %121, %cst_52 {dimension_numbers = #tpu.dot_dimension_numbers<[2], [2], [1], [1], [0, 0, 0, 1, 1, 1], [0], [0]>} : vector<2x8x8xf32>, vector<2x8x8xf32>, vector<2x8x8xf32> -> vector<2x8x8xf32>
    "tpu.trace_stop"() : () -> ()
    %cst_53 = arith.constant 0.353553385 : f32
    %123 = vector.broadcast %cst_53 : f32 to vector<2x8x8xf32>
    %124 = arith.mulf %122, %123 : vector<2x8x8xf32>
    %125 = arith.addf %124, %0 : vector<2x8x8xf32>
    %cst_54 = arith.constant dense<0xFF800000> : vector<2x8xf32>
    %126 = vector.multi_reduction <maximumf>, %125, %cst_54 [2] : vector<2x8x8xf32> to vector<2x8xf32>
    %127 = vector.shape_cast %126 : vector<2x8xf32> to vector<2x8x1xf32>
    %128 = vector.broadcast %127 : vector<2x8x1xf32> to vector<2x8x8xf32>
    %129 = arith.subf %125, %128 : vector<2x8x8xf32>
    %130 = math.exp %129 : vector<2x8x8xf32>
    %cst_55 = arith.constant dense<0.000000e+00> : vector<2x8xf32>
    %131 = vector.multi_reduction <add>, %130, %cst_55 [2] : vector<2x8x8xf32> to vector<2x8xf32>
    %132 = vector.shape_cast %131 : vector<2x8xf32> to vector<2x8x1xf32>
    %133 = tpu.reciprocal %132 {approx = true} : vector<2x8x1xf32> -> vector<2x8x1xf32>
    %134 = vector.broadcast %133 : vector<2x8x1xf32> to vector<2x8x8xf32>
    %135 = arith.mulf %130, %134 : vector<2x8x8xf32>
    %136 = vector.extract_strided_slice %52 {offsets = [0, 0, 24], sizes = [2, 8, 8], strides = [1, 1, 1]} : vector<2x8x32xf32> to vector<2x8x8xf32>
    "tpu.trace_start"() <{level = 10 : i32, message = "bqk,bkd->bqd"}> : () -> ()
    %cst_56 = arith.constant dense<0.000000e+00> : vector<2x8x8xf32>
    %137 = tpu.matmul %135, %136, %cst_56 {dimension_numbers = #tpu.dot_dimension_numbers<[2], [1], [1], [2], [0, 0, 0, 1, 1, 2], [0], [0]>} : vector<2x8x8xf32>, vector<2x8x8xf32>, vector<2x8x8xf32> -> vector<2x8x8xf32>
    "tpu.trace_stop"() : () -> ()
    %138 = vector.shape_cast %137 : vector<2x8x8xf32> to vector<16x8xf32>
    %139 = vector.extract_strided_slice %4 {offsets = [24, 0], sizes = [8, 32], strides = [1, 1]} : vector<32x32xf32> to vector<8x32xf32>
    %cst_57 = arith.constant dense<0.000000e+00> : vector<16x32xf32>
    %140 = tpu.matmul %138, %139, %cst_57 {dimension_numbers = #tpu.dot_dimension_numbers<[1], [0], [0], [1], [0, 0, 1, 1], [], []>} : vector<16x8xf32>, vector<8x32xf32>, vector<16x32xf32> -> vector<16x32xf32>
    %141 = arith.addf %119, %140 : vector<16x32xf32>
    %142 = vector.broadcast %10 : vector<1x32xf32> to vector<16x32xf32>
    %143 = arith.addf %141, %142 : vector<16x32xf32>
    %144 = vector.shape_cast %143 : vector<16x32xf32> to vector<2x8x32xf32>
    %145 = arith.addf %17, %144 : vector<2x8x32xf32>
    %146 = vector.shape_cast %145 : vector<2x8x32xf32> to vector<16x32xf32>
    %cst_58 = arith.constant dense<0.000000e+00> : vector<16xf32>
    %147 = vector.multi_reduction <add>, %146, %cst_58 [1] : vector<16x32xf32> to vector<16xf32>
    %148 = vector.shape_cast %147 : vector<16xf32> to vector<16x1xf32>
    %cst_59 = arith.constant 3.200000e+01 : f32
    %149 = vector.broadcast %cst_59 : f32 to vector<16x1xf32>
    %150 = arith.divf %148, %149 : vector<16x1xf32>
    %151 = vector.broadcast %150 : vector<16x1xf32> to vector<16x32xf32>
    %152 = arith.subf %146, %151 : vector<16x32xf32>
    %153 = arith.mulf %152, %152 : vector<16x32xf32>
    %cst_60 = arith.constant dense<0.000000e+00> : vector<16xf32>
    %154 = vector.multi_reduction <add>, %153, %cst_60 [1] : vector<16x32xf32> to vector<16xf32>
    %155 = vector.shape_cast %154 : vector<16xf32> to vector<16x1xf32>
    %cst_61 = arith.constant 3.200000e+01 : f32
    %156 = vector.broadcast %cst_61 : f32 to vector<16x1xf32>
    %157 = arith.divf %155, %156 : vector<16x1xf32>
    %158 = vector.broadcast %150 : vector<16x1xf32> to vector<16x32xf32>
    %159 = arith.subf %146, %158 : vector<16x32xf32>
    %cst_62 = arith.constant 9.99999974E-6 : f32
    %160 = vector.broadcast %cst_62 : f32 to vector<16x1xf32>
    %161 = arith.addf %157, %160 : vector<16x1xf32>
    %162 = math.rsqrt %161 : vector<16x1xf32>
    %163 = vector.broadcast %162 : vector<16x1xf32> to vector<16x32xf32>
    %164 = arith.mulf %159, %163 : vector<16x32xf32>
    %165 = vector.broadcast %13 : vector<1x32xf32> to vector<16x32xf32>
    %166 = arith.mulf %164, %165 : vector<16x32xf32>
    %167 = vector.broadcast %14 : vector<1x32xf32> to vector<16x32xf32>
    %168 = arith.addf %166, %167 : vector<16x32xf32>
    %cst_63 = arith.constant dense<0.000000e+00> : vector<16x64xf32>
    %169 = tpu.matmul %168, %5, %cst_63 {dimension_numbers = #tpu.dot_dimension_numbers<[1], [0], [0], [1], [0, 0, 1, 1], [], []>} : vector<16x32xf32>, vector<32x64xf32>, vector<16x64xf32> -> vector<16x64xf32>
    %170 = vector.broadcast %16 : vector<1x64xf32> to vector<16x64xf32>
    %171 = arith.addf %169, %170 : vector<16x64xf32>
    %cst_64 = arith.constant 0.000000e+00 : f32
    %172 = vector.broadcast %cst_64 : f32 to vector<16x64xf32>
    %173 = arith.maximumf %171, %172 : vector<16x64xf32>
    %cst_65 = arith.constant dense<0.000000e+00> : vector<16x32xf32>
    %174 = tpu.matmul %173, %6, %cst_65 {dimension_numbers = #tpu.dot_dimension_numbers<[1], [0], [0], [1], [0, 0, 1, 1], [], []>} : vector<16x64xf32>, vector<64x32xf32>, vector<16x32xf32> -> vector<16x32xf32>
    %175 = vector.broadcast %15 : vector<1x32xf32> to vector<16x32xf32>
    %176 = arith.addf %174, %175 : vector<16x32xf32>
    %177 = vector.shape_cast %176 : vector<16x32xf32> to vector<2x8x32xf32>
    %178 = arith.addf %145, %177 : vector<2x8x32xf32>
    %179 = vector.shape_cast %178 : vector<2x8x32xf32> to vector<16x32xf32>
    %cst_66 = arith.constant dense<0.000000e+00> : vector<16xf32>
    %180 = vector.multi_reduction <add>, %179, %cst_66 [1] : vector<16x32xf32> to vector<16xf32>
    %181 = vector.shape_cast %180 : vector<16xf32> to vector<16x1xf32>
    %cst_67 = arith.constant 3.200000e+01 : f32
    %182 = vector.broadcast %cst_67 : f32 to vector<16x1xf32>
    %183 = arith.divf %181, %182 : vector<16x1xf32>
    %184 = vector.broadcast %183 : vector<16x1xf32> to vector<16x32xf32>
    %185 = arith.subf %179, %184 : vector<16x32xf32>
    %186 = arith.mulf %185, %185 : vector<16x32xf32>
    %cst_68 = arith.constant dense<0.000000e+00> : vector<16xf32>
    %187 = vector.multi_reduction <add>, %186, %cst_68 [1] : vector<16x32xf32> to vector<16xf32>
    %188 = vector.shape_cast %187 : vector<16xf32> to vector<16x1xf32>
    %cst_69 = arith.constant 3.200000e+01 : f32
    %189 = vector.broadcast %cst_69 : f32 to vector<16x1xf32>
    %190 = arith.divf %188, %189 : vector<16x1xf32>
    %191 = vector.broadcast %183 : vector<16x1xf32> to vector<16x32xf32>
    %192 = arith.subf %179, %191 : vector<16x32xf32>
    %cst_70 = arith.constant 9.99999974E-6 : f32
    %193 = vector.broadcast %cst_70 : f32 to vector<16x1xf32>
    %194 = arith.addf %190, %193 : vector<16x1xf32>
    %195 = math.rsqrt %194 : vector<16x1xf32>
    %196 = vector.broadcast %195 : vector<16x1xf32> to vector<16x32xf32>
    %197 = arith.mulf %192, %196 : vector<16x32xf32>
    %198 = vector.broadcast %11 : vector<1x32xf32> to vector<16x32xf32>
    %199 = arith.mulf %197, %198 : vector<16x32xf32>
    %200 = vector.broadcast %12 : vector<1x32xf32> to vector<16x32xf32>
    %201 = arith.addf %199, %200 : vector<16x32xf32>
    %cst_71 = arith.constant dense<0.000000e+00> : vector<16x32xf32>
    %202 = tpu.matmul %201, %1, %cst_71 {dimension_numbers = #tpu.dot_dimension_numbers<[1], [0], [0], [1], [0, 0, 1, 1], [], []>} : vector<16x32xf32>, vector<32x32xf32>, vector<16x32xf32> -> vector<16x32xf32>
    %203 = vector.broadcast %7 : vector<1x32xf32> to vector<16x32xf32>
    %204 = arith.addf %202, %203 : vector<16x32xf32>
    %205 = vector.shape_cast %204 : vector<16x32xf32> to vector<2x8x32xf32>
    %cst_72 = arith.constant dense<0.000000e+00> : vector<16x32xf32>
    %206 = tpu.matmul %201, %2, %cst_72 {dimension_numbers = #tpu.dot_dimension_numbers<[1], [0], [0], [1], [0, 0, 1, 1], [], []>} : vector<16x32xf32>, vector<32x32xf32>, vector<16x32xf32> -> vector<16x32xf32>
    %207 = vector.broadcast %8 : vector<1x32xf32> to vector<16x32xf32>
    %208 = arith.addf %206, %207 : vector<16x32xf32>
    %209 = vector.shape_cast %208 : vector<16x32xf32> to vector<2x8x32xf32>
    %cst_73 = arith.constant dense<0.000000e+00> : vector<16x32xf32>
    %210 = tpu.matmul %201, %3, %cst_73 {dimension_numbers = #tpu.dot_dimension_numbers<[1], [0], [0], [1], [0, 0, 1, 1], [], []>} : vector<16x32xf32>, vector<32x32xf32>, vector<16x32xf32> -> vector<16x32xf32>
    %211 = vector.broadcast %9 : vector<1x32xf32> to vector<16x32xf32>
    %212 = arith.addf %210, %211 : vector<16x32xf32>
    %213 = vector.shape_cast %212 : vector<16x32xf32> to vector<2x8x32xf32>
    %cst_74 = arith.constant 0.000000e+00 : f32
    %214 = vector.broadcast %cst_74 : f32 to vector<16x32xf32>
    %215 = vector.extract_strided_slice %205 {offsets = [0, 0, 0], sizes = [2, 8, 8], strides = [1, 1, 1]} : vector<2x8x32xf32> to vector<2x8x8xf32>
    %216 = vector.extract_strided_slice %209 {offsets = [0, 0, 0], sizes = [2, 8, 8], strides = [1, 1, 1]} : vector<2x8x32xf32> to vector<2x8x8xf32>
    "tpu.trace_start"() <{level = 10 : i32, message = "bqd,bkd->bqk"}> : () -> ()
    %cst_75 = arith.constant dense<0.000000e+00> : vector<2x8x8xf32>
    %217 = tpu.matmul %215, %216, %cst_75 {dimension_numbers = #tpu.dot_dimension_numbers<[2], [2], [1], [1], [0, 0, 0, 1, 1, 1], [0], [0]>} : vector<2x8x8xf32>, vector<2x8x8xf32>, vector<2x8x8xf32> -> vector<2x8x8xf32>
    "tpu.trace_stop"() : () -> ()
    %cst_76 = arith.constant 0.353553385 : f32
    %218 = vector.broadcast %cst_76 : f32 to vector<2x8x8xf32>
    %219 = arith.mulf %217, %218 : vector<2x8x8xf32>
    %220 = arith.addf %219, %0 : vector<2x8x8xf32>
    %cst_77 = arith.constant dense<0xFF800000> : vector<2x8xf32>
    %221 = vector.multi_reduction <maximumf>, %220, %cst_77 [2] : vector<2x8x8xf32> to vector<2x8xf32>
    %222 = vector.shape_cast %221 : vector<2x8xf32> to vector<2x8x1xf32>
    %223 = vector.broadcast %222 : vector<2x8x1xf32> to vector<2x8x8xf32>
    %224 = arith.subf %220, %223 : vector<2x8x8xf32>
    %225 = math.exp %224 : vector<2x8x8xf32>
    %cst_78 = arith.constant dense<0.000000e+00> : vector<2x8xf32>
    %226 = vector.multi_reduction <add>, %225, %cst_78 [2] : vector<2x8x8xf32> to vector<2x8xf32>
    %227 = vector.shape_cast %226 : vector<2x8xf32> to vector<2x8x1xf32>
    %228 = tpu.reciprocal %227 {approx = true} : vector<2x8x1xf32> -> vector<2x8x1xf32>
    %229 = vector.broadcast %228 : vector<2x8x1xf32> to vector<2x8x8xf32>
    %230 = arith.mulf %225, %229 : vector<2x8x8xf32>
    %231 = vector.extract_strided_slice %213 {offsets = [0, 0, 0], sizes = [2, 8, 8], strides = [1, 1, 1]} : vector<2x8x32xf32> to vector<2x8x8xf32>
    "tpu.trace_start"() <{level = 10 : i32, message = "bqk,bkd->bqd"}> : () -> ()
    %cst_79 = arith.constant dense<0.000000e+00> : vector<2x8x8xf32>
    %232 = tpu.matmul %230, %231, %cst_79 {dimension_numbers = #tpu.dot_dimension_numbers<[2], [1], [1], [2], [0, 0, 0, 1, 1, 2], [0], [0]>} : vector<2x8x8xf32>, vector<2x8x8xf32>, vector<2x8x8xf32> -> vector<2x8x8xf32>
    "tpu.trace_stop"() : () -> ()
    %233 = vector.shape_cast %232 : vector<2x8x8xf32> to vector<16x8xf32>
    %234 = vector.extract_strided_slice %4 {offsets = [0, 0], sizes = [8, 32], strides = [1, 1]} : vector<32x32xf32> to vector<8x32xf32>
    %cst_80 = arith.constant dense<0.000000e+00> : vector<16x32xf32>
    %235 = tpu.matmul %233, %234, %cst_80 {dimension_numbers = #tpu.dot_dimension_numbers<[1], [0], [0], [1], [0, 0, 1, 1], [], []>} : vector<16x8xf32>, vector<8x32xf32>, vector<16x32xf32> -> vector<16x32xf32>
    %236 = arith.addf %214, %235 : vector<16x32xf32>
    %237 = vector.extract_strided_slice %205 {offsets = [0, 0, 8], sizes = [2, 8, 8], strides = [1, 1, 1]} : vector<2x8x32xf32> to vector<2x8x8xf32>
    %238 = vector.extract_strided_slice %209 {offsets = [0, 0, 8], sizes = [2, 8, 8], strides = [1, 1, 1]} : vector<2x8x32xf32> to vector<2x8x8xf32>
    "tpu.trace_start"() <{level = 10 : i32, message = "bqd,bkd->bqk"}> : () -> ()
    %cst_81 = arith.constant dense<0.000000e+00> : vector<2x8x8xf32>
    %239 = tpu.matmul %237, %238, %cst_81 {dimension_numbers = #tpu.dot_dimension_numbers<[2], [2], [1], [1], [0, 0, 0, 1, 1, 1], [0], [0]>} : vector<2x8x8xf32>, vector<2x8x8xf32>, vector<2x8x8xf32> -> vector<2x8x8xf32>
    "tpu.trace_stop"() : () -> ()
    %cst_82 = arith.constant 0.353553385 : f32
    %240 = vector.broadcast %cst_82 : f32 to vector<2x8x8xf32>
    %241 = arith.mulf %239, %240 : vector<2x8x8xf32>
    %242 = arith.addf %241, %0 : vector<2x8x8xf32>
    %cst_83 = arith.constant dense<0xFF800000> : vector<2x8xf32>
    %243 = vector.multi_reduction <maximumf>, %242, %cst_83 [2] : vector<2x8x8xf32> to vector<2x8xf32>
    %244 = vector.shape_cast %243 : vector<2x8xf32> to vector<2x8x1xf32>
    %245 = vector.broadcast %244 : vector<2x8x1xf32> to vector<2x8x8xf32>
    %246 = arith.subf %242, %245 : vector<2x8x8xf32>
    %247 = math.exp %246 : vector<2x8x8xf32>
    %cst_84 = arith.constant dense<0.000000e+00> : vector<2x8xf32>
    %248 = vector.multi_reduction <add>, %247, %cst_84 [2] : vector<2x8x8xf32> to vector<2x8xf32>
    %249 = vector.shape_cast %248 : vector<2x8xf32> to vector<2x8x1xf32>
    %250 = tpu.reciprocal %249 {approx = true} : vector<2x8x1xf32> -> vector<2x8x1xf32>
    %251 = vector.broadcast %250 : vector<2x8x1xf32> to vector<2x8x8xf32>
    %252 = arith.mulf %247, %251 : vector<2x8x8xf32>
    %253 = vector.extract_strided_slice %213 {offsets = [0, 0, 8], sizes = [2, 8, 8], strides = [1, 1, 1]} : vector<2x8x32xf32> to vector<2x8x8xf32>
    "tpu.trace_start"() <{level = 10 : i32, message = "bqk,bkd->bqd"}> : () -> ()
    %cst_85 = arith.constant dense<0.000000e+00> : vector<2x8x8xf32>
    %254 = tpu.matmul %252, %253, %cst_85 {dimension_numbers = #tpu.dot_dimension_numbers<[2], [1], [1], [2], [0, 0, 0, 1, 1, 2], [0], [0]>} : vector<2x8x8xf32>, vector<2x8x8xf32>, vector<2x8x8xf32> -> vector<2x8x8xf32>
    "tpu.trace_stop"() : () -> ()
    %255 = vector.shape_cast %254 : vector<2x8x8xf32> to vector<16x8xf32>
    %256 = vector.extract_strided_slice %4 {offsets = [8, 0], sizes = [8, 32], strides = [1, 1]} : vector<32x32xf32> to vector<8x32xf32>
    %cst_86 = arith.constant dense<0.000000e+00> : vector<16x32xf32>
    %257 = tpu.matmul %255, %256, %cst_86 {dimension_numbers = #tpu.dot_dimension_numbers<[1], [0], [0], [1], [0, 0, 1, 1], [], []>} : vector<16x8xf32>, vector<8x32xf32>, vector<16x32xf32> -> vector<16x32xf32>
    %258 = arith.addf %236, %257 : vector<16x32xf32>
    %259 = vector.extract_strided_slice %205 {offsets = [0, 0, 16], sizes = [2, 8, 8], strides = [1, 1, 1]} : vector<2x8x32xf32> to vector<2x8x8xf32>
    %260 = vector.extract_strided_slice %209 {offsets = [0, 0, 16], sizes = [2, 8, 8], strides = [1, 1, 1]} : vector<2x8x32xf32> to vector<2x8x8xf32>
    "tpu.trace_start"() <{level = 10 : i32, message = "bqd,bkd->bqk"}> : () -> ()
    %cst_87 = arith.constant dense<0.000000e+00> : vector<2x8x8xf32>
    %261 = tpu.matmul %259, %260, %cst_87 {dimension_numbers = #tpu.dot_dimension_numbers<[2], [2], [1], [1], [0, 0, 0, 1, 1, 1], [0], [0]>} : vector<2x8x8xf32>, vector<2x8x8xf32>, vector<2x8x8xf32> -> vector<2x8x8xf32>
    "tpu.trace_stop"() : () -> ()
    %cst_88 = arith.constant 0.353553385 : f32
    %262 = vector.broadcast %cst_88 : f32 to vector<2x8x8xf32>
    %263 = arith.mulf %261, %262 : vector<2x8x8xf32>
    %264 = arith.addf %263, %0 : vector<2x8x8xf32>
    %cst_89 = arith.constant dense<0xFF800000> : vector<2x8xf32>
    %265 = vector.multi_reduction <maximumf>, %264, %cst_89 [2] : vector<2x8x8xf32> to vector<2x8xf32>
    %266 = vector.shape_cast %265 : vector<2x8xf32> to vector<2x8x1xf32>
    %267 = vector.broadcast %266 : vector<2x8x1xf32> to vector<2x8x8xf32>
    %268 = arith.subf %264, %267 : vector<2x8x8xf32>
    %269 = math.exp %268 : vector<2x8x8xf32>
    %cst_90 = arith.constant dense<0.000000e+00> : vector<2x8xf32>
    %270 = vector.multi_reduction <add>, %269, %cst_90 [2] : vector<2x8x8xf32> to vector<2x8xf32>
    %271 = vector.shape_cast %270 : vector<2x8xf32> to vector<2x8x1xf32>
    %272 = tpu.reciprocal %271 {approx = true} : vector<2x8x1xf32> -> vector<2x8x1xf32>
    %273 = vector.broadcast %272 : vector<2x8x1xf32> to vector<2x8x8xf32>
    %274 = arith.mulf %269, %273 : vector<2x8x8xf32>
    %275 = vector.extract_strided_slice %213 {offsets = [0, 0, 16], sizes = [2, 8, 8], strides = [1, 1, 1]} : vector<2x8x32xf32> to vector<2x8x8xf32>
    "tpu.trace_start"() <{level = 10 : i32, message = "bqk,bkd->bqd"}> : () -> ()
    %cst_91 = arith.constant dense<0.000000e+00> : vector<2x8x8xf32>
    %276 = tpu.matmul %274, %275, %cst_91 {dimension_numbers = #tpu.dot_dimension_numbers<[2], [1], [1], [2], [0, 0, 0, 1, 1, 2], [0], [0]>} : vector<2x8x8xf32>, vector<2x8x8xf32>, vector<2x8x8xf32> -> vector<2x8x8xf32>
    "tpu.trace_stop"() : () -> ()
    %277 = vector.shape_cast %276 : vector<2x8x8xf32> to vector<16x8xf32>
    %278 = vector.extract_strided_slice %4 {offsets = [16, 0], sizes = [8, 32], strides = [1, 1]} : vector<32x32xf32> to vector<8x32xf32>
    %cst_92 = arith.constant dense<0.000000e+00> : vector<16x32xf32>
    %279 = tpu.matmul %277, %278, %cst_92 {dimension_numbers = #tpu.dot_dimension_numbers<[1], [0], [0], [1], [0, 0, 1, 1], [], []>} : vector<16x8xf32>, vector<8x32xf32>, vector<16x32xf32> -> vector<16x32xf32>
    %280 = arith.addf %258, %279 : vector<16x32xf32>
    %281 = vector.extract_strided_slice %205 {offsets = [0, 0, 24], sizes = [2, 8, 8], strides = [1, 1, 1]} : vector<2x8x32xf32> to vector<2x8x8xf32>
    %282 = vector.extract_strided_slice %209 {offsets = [0, 0, 24], sizes = [2, 8, 8], strides = [1, 1, 1]} : vector<2x8x32xf32> to vector<2x8x8xf32>
    "tpu.trace_start"() <{level = 10 : i32, message = "bqd,bkd->bqk"}> : () -> ()
    %cst_93 = arith.constant dense<0.000000e+00> : vector<2x8x8xf32>
    %283 = tpu.matmul %281, %282, %cst_93 {dimension_numbers = #tpu.dot_dimension_numbers<[2], [2], [1], [1], [0, 0, 0, 1, 1, 1], [0], [0]>} : vector<2x8x8xf32>, vector<2x8x8xf32>, vector<2x8x8xf32> -> vector<2x8x8xf32>
    "tpu.trace_stop"() : () -> ()
    %cst_94 = arith.constant 0.353553385 : f32
    %284 = vector.broadcast %cst_94 : f32 to vector<2x8x8xf32>
    %285 = arith.mulf %283, %284 : vector<2x8x8xf32>
    %286 = arith.addf %285, %0 : vector<2x8x8xf32>
    %cst_95 = arith.constant dense<0xFF800000> : vector<2x8xf32>
    %287 = vector.multi_reduction <maximumf>, %286, %cst_95 [2] : vector<2x8x8xf32> to vector<2x8xf32>
    %288 = vector.shape_cast %287 : vector<2x8xf32> to vector<2x8x1xf32>
    %289 = vector.broadcast %288 : vector<2x8x1xf32> to vector<2x8x8xf32>
    %290 = arith.subf %286, %289 : vector<2x8x8xf32>
    %291 = math.exp %290 : vector<2x8x8xf32>
    %cst_96 = arith.constant dense<0.000000e+00> : vector<2x8xf32>
    %292 = vector.multi_reduction <add>, %291, %cst_96 [2] : vector<2x8x8xf32> to vector<2x8xf32>
    %293 = vector.shape_cast %292 : vector<2x8xf32> to vector<2x8x1xf32>
    %294 = tpu.reciprocal %293 {approx = true} : vector<2x8x1xf32> -> vector<2x8x1xf32>
    %295 = vector.broadcast %294 : vector<2x8x1xf32> to vector<2x8x8xf32>
    %296 = arith.mulf %291, %295 : vector<2x8x8xf32>
    %297 = vector.extract_strided_slice %213 {offsets = [0, 0, 24], sizes = [2, 8, 8], strides = [1, 1, 1]} : vector<2x8x32xf32> to vector<2x8x8xf32>
    "tpu.trace_start"() <{level = 10 : i32, message = "bqk,bkd->bqd"}> : () -> ()
    %cst_97 = arith.constant dense<0.000000e+00> : vector<2x8x8xf32>
    %298 = tpu.matmul %296, %297, %cst_97 {dimension_numbers = #tpu.dot_dimension_numbers<[2], [1], [1], [2], [0, 0, 0, 1, 1, 2], [0], [0]>} : vector<2x8x8xf32>, vector<2x8x8xf32>, vector<2x8x8xf32> -> vector<2x8x8xf32>
    "tpu.trace_stop"() : () -> ()
    %299 = vector.shape_cast %298 : vector<2x8x8xf32> to vector<16x8xf32>
    %300 = vector.extract_strided_slice %4 {offsets = [24, 0], sizes = [8, 32], strides = [1, 1]} : vector<32x32xf32> to vector<8x32xf32>
    %cst_98 = arith.constant dense<0.000000e+00> : vector<16x32xf32>
    %301 = tpu.matmul %299, %300, %cst_98 {dimension_numbers = #tpu.dot_dimension_numbers<[1], [0], [0], [1], [0, 0, 1, 1], [], []>} : vector<16x8xf32>, vector<8x32xf32>, vector<16x32xf32> -> vector<16x32xf32>
    %302 = arith.addf %280, %301 : vector<16x32xf32>
    %303 = vector.broadcast %10 : vector<1x32xf32> to vector<16x32xf32>
    %304 = arith.addf %302, %303 : vector<16x32xf32>
    %305 = vector.shape_cast %304 : vector<16x32xf32> to vector<2x8x32xf32>
    %306 = arith.addf %178, %305 : vector<2x8x32xf32>
    %307 = vector.shape_cast %306 : vector<2x8x32xf32> to vector<16x32xf32>
    %cst_99 = arith.constant dense<0.000000e+00> : vector<16xf32>
    %308 = vector.multi_reduction <add>, %307, %cst_99 [1] : vector<16x32xf32> to vector<16xf32>
    %309 = vector.shape_cast %308 : vector<16xf32> to vector<16x1xf32>
    %cst_100 = arith.constant 3.200000e+01 : f32
    %310 = vector.broadcast %cst_100 : f32 to vector<16x1xf32>
    %311 = arith.divf %309, %310 : vector<16x1xf32>
    %312 = vector.broadcast %311 : vector<16x1xf32> to vector<16x32xf32>
    %313 = arith.subf %307, %312 : vector<16x32xf32>
    %314 = arith.mulf %313, %313 : vector<16x32xf32>
    %cst_101 = arith.constant dense<0.000000e+00> : vector<16xf32>
    %315 = vector.multi_reduction <add>, %314, %cst_101 [1] : vector<16x32xf32> to vector<16xf32>
    %316 = vector.shape_cast %315 : vector<16xf32> to vector<16x1xf32>
    %cst_102 = arith.constant 3.200000e+01 : f32
    %317 = vector.broadcast %cst_102 : f32 to vector<16x1xf32>
    %318 = arith.divf %316, %317 : vector<16x1xf32>
    %319 = vector.broadcast %311 : vector<16x1xf32> to vector<16x32xf32>
    %320 = arith.subf %307, %319 : vector<16x32xf32>
    %cst_103 = arith.constant 9.99999974E-6 : f32
    %321 = vector.broadcast %cst_103 : f32 to vector<16x1xf32>
    %322 = arith.addf %318, %321 : vector<16x1xf32>
    %323 = math.rsqrt %322 : vector<16x1xf32>
    %324 = vector.broadcast %323 : vector<16x1xf32> to vector<16x32xf32>
    %325 = arith.mulf %320, %324 : vector<16x32xf32>
    %326 = vector.broadcast %13 : vector<1x32xf32> to vector<16x32xf32>
    %327 = arith.mulf %325, %326 : vector<16x32xf32>
    %328 = vector.broadcast %14 : vector<1x32xf32> to vector<16x32xf32>
    %329 = arith.addf %327, %328 : vector<16x32xf32>
    %cst_104 = arith.constant dense<0.000000e+00> : vector<16x64xf32>
    %330 = tpu.matmul %329, %5, %cst_104 {dimension_numbers = #tpu.dot_dimension_numbers<[1], [0], [0], [1], [0, 0, 1, 1], [], []>} : vector<16x32xf32>, vector<32x64xf32>, vector<16x64xf32> -> vector<16x64xf32>
    %331 = vector.broadcast %16 : vector<1x64xf32> to vector<16x64xf32>
    %332 = arith.addf %330, %331 : vector<16x64xf32>
    %cst_105 = arith.constant 0.000000e+00 : f32
    %333 = vector.broadcast %cst_105 : f32 to vector<16x64xf32>
    %334 = arith.maximumf %332, %333 : vector<16x64xf32>
    %cst_106 = arith.constant dense<0.000000e+00> : vector<16x32xf32>
    %335 = tpu.matmul %334, %6, %cst_106 {dimension_numbers = #tpu.dot_dimension_numbers<[1], [0], [0], [1], [0, 0, 1, 1], [], []>} : vector<16x64xf32>, vector<64x32xf32>, vector<16x32xf32> -> vector<16x32xf32>
    %336 = vector.broadcast %15 : vector<1x32xf32> to vector<16x32xf32>
    %337 = arith.addf %335, %336 : vector<16x32xf32>
    %338 = vector.shape_cast %337 : vector<16x32xf32> to vector<2x8x32xf32>
    %339 = arith.addf %306, %338 : vector<2x8x32xf32>
    %c0_107 = arith.constant 0 : index
    %c0_108 = arith.constant 0 : index
    %c0_109 = arith.constant 0 : index
    %340 = vector.load %arg8[%c0_107, %c0_108, %c0_109] : memref<2x8x32xf32, #tpu.memory_space<vmem>>, vector<2x8x32xf32>
    tpu.vector_store %arg8[%c0_107, %c0_108, %c0_109], %339 {strides = array<i32>} : memref<2x8x32xf32, #tpu.memory_space<vmem>>, vector<2x8x32xf32>,
    return
  }
  func.func @transform_0(%arg0: i32) -> (i32, i32, i32) {
    %c0_i32 = arith.constant 0 : i32
    %c0_i32_0 = arith.constant 0 : i32
    %c0_i32_1 = arith.constant 0 : i32
    %c0_i32_2 = arith.constant 0 : i32
    return %c0_i32, %c0_i32_0, %c0_i32_1 : i32, i32, i32
  }
  func.func @transform_1(%arg0: i32) -> (i32, i32, i32) {
    %c0_i32 = arith.constant 0 : i32
    %c0_i32_0 = arith.constant 0 : i32
    %c0_i32_1 = arith.constant 0 : i32
    %c0_i32_2 = arith.constant 0 : i32
    return %c0_i32, %c0_i32_0, %c0_i32_1 : i32, i32, i32
  }
  func.func @transform_2(%arg0: i32) -> (i32, i32) {
    %c0_i32 = arith.constant 0 : i32
    %c0_i32_0 = arith.constant 0 : i32
    %c0_i32_1 = arith.constant 0 : i32
    return %c0_i32, %c0_i32_0 : i32, i32
  }
  func.func @transform_3(%arg0: i32) -> (i32, i32) {
    %c0_i32 = arith.constant 0 : i32
    %c0_i32_0 = arith.constant 0 : i32
    %c0_i32_1 = arith.constant 0 : i32
    return %c0_i32, %c0_i32_0 : i32, i32
  }
  func.func @transform_4(%arg0: i32) -> (i32, i32) {
    %c0_i32 = arith.constant 0 : i32
    %c0_i32_0 = arith.constant 0 : i32
    %c0_i32_1 = arith.constant 0 : i32
    return %c0_i32, %c0_i32_0 : i32, i32
  }
  func.func @transform_5(%arg0: i32) -> (i32, i32) {
    %c0_i32 = arith.constant 0 : i32
    %c0_i32_0 = arith.constant 0 : i32
    %c0_i32_1 = arith.constant 0 : i32
    return %c0_i32, %c0_i32_0 : i32, i32
  }
  func.func @transform_6(%arg0: i32) -> (i32, i32) {
    %c0_i32 = arith.constant 0 : i32
    %c0_i32_0 = arith.constant 0 : i32
    %c0_i32_1 = arith.constant 0 : i32
    return %c0_i32, %c0_i32_0 : i32, i32
  }
  func.func @transform_7(%arg0: i32) -> (i32, i32, i32) {
    %c0_i32 = arith.constant 0 : i32
    %c0_i32_0 = arith.constant 0 : i32
    %c0_i32_1 = arith.constant 0 : i32
    %c0_i32_2 = arith.constant 0 : i32
    return %c0_i32, %c0_i32_0, %c0_i32_1 : i32, i32, i32
  }
}

</mosaic_0001>

<llo_original>
// kernel: tpu_custom_call.1
$region0: #{tpu_custom_call.1}
  #allocation0 [shape = 'u32[]', space=smem, size = 0x4, offset = 0x4, fixed_abs, tag = 'smem constant byte address 0x4 - core index']
  #allocation1 [shape = 'u32[72,128]{1,0:T(1,128)}', space=vmem, size = 0x9000, scoped, tag = 'internal scratch']
  %s0 = inlined_call_operand.vmem [shape: f32[2,8,32], index: 0, kind: input, shape index: {}]
  %s1 = inlined_call_operand.vmem [shape: f32[2,8,8], index: 1, kind: input, shape index: {}]
  %s2 = inlined_call_operand.vmem [shape: f32[32,128], index: 2, kind: input, shape index: {}]
  %s3 = inlined_call_operand.vmem [shape: f32[32,64], index: 3, kind: input, shape index: {}]
  %s4 = inlined_call_operand.vmem [shape: f32[64,32], index: 4, kind: input, shape index: {}]
  %s5 = inlined_call_operand.hbm [shape: f32[9,32], index: 5, kind: input, shape index: {}]
  %s6 = inlined_call_operand.vmem [shape: f32[1,64], index: 6, kind: input, shape index: {}]
  %s7 = inlined_call_operand.hbm [shape: f32[2,8,32], index: 7, kind: output, shape index: {}]
  %s8 = sld [smem:[#allocation0]]
  $region42: #{tpu_custom_call.1} parent=0
    _
  %s10 = ssub.s32 1, %s8
  %s11 = scalar_select 0, %s10, %s8
  $region1: #{tpu_custom_call.1} parent=0
    #allocation2 [shape = 'u8[8192]{0}', space=vmem, size = 0x2000, scoped, tag = 'input window, operand 5, single buffered']
    #allocation3 [shape = 's32[1]{0}', space=sflag, size = 0x4, scoped, tag = 'scoped memory for tpu_custom_call.1']
    #allocation4 [shape = 's32[1]{0}', space=sflag, size = 0x4, scoped, tag = 'scoped memory for tpu_custom_call.1']
    #allocation5 [shape = 'u8[8192]{0}', space=vmem, size = 0x2000, scoped, tag = 'output window, operand 0, single buffered']
    %12 = vsyncpa [#allocation3], 0
    %13 = vsyncpa [#allocation4], 0
    // Predicated region
    $region2: #{tpu_custom_call.1} parent=1 // pred_check
      _
    $region3: #{tpu_custom_call.1} parent=1 // pred_check_branch
      %15 = sbr.rel (0) target = $region5
    $region4: #{tpu_custom_call.1} parent=1 // pred_region
      _
    $region5: #{tpu_custom_call.1} parent=1 // pred_fallthru
      _
    // Predicated region
    $region6: #{tpu_custom_call.1} parent=1 // pred_check
      _
    $region7: #{tpu_custom_call.1} parent=1 // pred_check_branch
      %17 = sbr.rel (0) target = $region9
    $region8: #{tpu_custom_call.1} parent=1 // pred_region
      _
    $region9: #{tpu_custom_call.1} parent=1 // pred_fallthru
      _
    // Predicated region
    $region10: #{tpu_custom_call.1} parent=1 // pred_check
      _
    $region11: #{tpu_custom_call.1} parent=1 // pred_check_branch
      %19 = sbr.rel (0) target = $region13
    $region12: #{tpu_custom_call.1} parent=1 // pred_region
      _
    $region13: #{tpu_custom_call.1} parent=1 // pred_fallthru
      _
    // Predicated region
    $region14: #{tpu_custom_call.1} parent=1 // pred_check
      _
    $region15: #{tpu_custom_call.1} parent=1 // pred_check_branch
      %21 = sbr.rel (0) target = $region17
    $region16: #{tpu_custom_call.1} parent=1 // pred_region
      _
    $region17: #{tpu_custom_call.1} parent=1 // pred_fallthru
      _
    // Predicated region
    $region18: #{tpu_custom_call.1} parent=1 // pred_check
      _
    $region19: #{tpu_custom_call.1} parent=1 // pred_check_branch
      %23 = sbr.rel (0) target = $region21
    $region20: #{tpu_custom_call.1} parent=1 // pred_region
      _
    $region21: #{tpu_custom_call.1} parent=1 // pred_fallthru
      _
    // Predicated region
    $region22: #{tpu_custom_call.1} parent=1 // pred_check
      _
    $region23: #{tpu_custom_call.1} parent=1 // pred_check_branch
      %25 = sbr.rel (0) target = $region25
    $region24: #{tpu_custom_call.1} parent=1 // pred_region
      %27 = vsyncadd [#allocation3], 0
      %s28 = sshll.u32 %s5, 4
      %s29 = int_to_ptr.hbm [resolvable:$true] %s28
      %s30 = sshll.u32 [#allocation2], 4
      %s31 = int_to_ptr.vmem [resolvable:$true] %s30
      %36 = dma.hbm_to_vmem [thread:$0]  %s29, 256, %s31, [#allocation3], 128, 128, 8
    $region25: #{tpu_custom_call.1} parent=1 // pred_fallthru
      _
    // Predicated region
    $region26: #{tpu_custom_call.1} parent=1 // pred_check
      _
    $region27: #{tpu_custom_call.1} parent=1 // pred_check_branch
      %38 = sbr.rel (0) target = $region29
    $region28: #{tpu_custom_call.1} parent=1 // pred_region
      _
    $region29: #{tpu_custom_call.1} parent=1 // pred_fallthru
      _
    // Predicated region
    $region30: #{tpu_custom_call.1} parent=1 // pred_check
      _
    $region31: #{tpu_custom_call.1} parent=1 // pred_check_branch
      %40 = sbr.rel (0) target = $region33
    $region32: #{tpu_custom_call.1} parent=1 // pred_region
      %42 = dma.done [#allocation3], 256
    $region33: #{tpu_custom_call.1} parent=1 // pred_fallthru
      _
    %v43 = vld [vmem:[%s1] sm:$0xff]
    %v44 = vld [vmem:[%s1 + $0x8] sm:$0xff]
    %v45 = vld [vmem:[%s2] sm:$0xff]
    %v46 = vld [vmem:[%s2 + $0x8] sm:$0xff]
    %v47 = vld [vmem:[%s2 + $0x10] sm:$0xff]
    %v48 = vld [vmem:[%s2 + $0x18] sm:$0xff]
    %v49 = vld [vmem:[%s3] sm:$0xff]
    %v50 = vld [vmem:[%s3 + $0x8] sm:$0xff]
    %v51 = vld [vmem:[%s3 + $0x10] sm:$0xff]
    %v52 = vld [vmem:[%s3 + $0x18] sm:$0xff]
    %v53 = vld [vmem:[%s4] sm:$0xff]
    %v54 = vld [vmem:[%s4 + $0x8] sm:$0xff]
    %v55 = vld [vmem:[%s4 + $0x10] sm:$0xff]
    %v56 = vld [vmem:[%s4 + $0x18] sm:$0xff]
    %v57 = vld [vmem:[%s4 + $0x20] sm:$0xff]
    %v58 = vld [vmem:[%s4 + $0x28] sm:$0xff]
    %v59 = vld [vmem:[%s4 + $0x30] sm:$0xff]
    %v60 = vld [vmem:[%s4 + $0x38] sm:$0xff]
    %v61 = vld [vmem:[#allocation2] sm:$0x1]
    %v62 = vld [vmem:[#allocation2 + $0x1] sm:$0x1]
    %v63 = vld [vmem:[#allocation2 + $0x2] sm:$0x1]
    %v64 = vld [vmem:[#allocation2 + $0x3] sm:$0x1]
    %v65 = vld [vmem:[#allocation2 + $0x4] sm:$0x1]
    %v66 = vld [vmem:[#allocation2 + $0x5] sm:$0x1]
    %v67 = vld [vmem:[#allocation2 + $0x6] sm:$0x1]
    %v68 = vld [vmem:[#allocation2 + $0x7] sm:$0x1]
    %v69 = vld [vmem:[#allocation2 + $0x8] sm:$0x1]
    %v70 = vld [vmem:[%s6] sm:$0x1]
    %v71 = vld [vmem:[%s0] sm:$0xff]
    %v72 = vld [vmem:[%s0 + $0x8] sm:$0xff]
    %vm73 = vcmask 261120
    %v74 = vsel %vm73, %v71, 0.0
    %75 = vadd.xlane.f32.xlu0 %v74
    %v76 = vpop.xlane.xlu0 %75
    %v77 = vsel %vm73, %v72, 0.0
    %78 = vadd.xlane.f32.xlu0 %v77
    %v79 = vpop.xlane.xlu0 %78
    %v80 = vrcp.pop 32.0
    %v81 = vmul.f32 32.0, %v80
    %v82 = vsub.f32 1.0, %v81
    %v83 = vmul.f32 %v80, %v82
    %v84 = vadd.f32 %v80, %v83
    %vm85 = vweird.f32 %v80
    %v86 = vsel %vm85, %v80, %v84
    %v87 = vmul.f32 %v76, %v86
    %v88 = vmul.f32 %v79, %v86
    %v89 = vsub.f32 %v71, %v87
    %v90 = vsub.f32 %v72, %v88
    %v91 = vmul.f32 %v89, %v89
    %v92 = vmul.f32 %v90, %v90
    %v93 = vsel %vm73, %v91, 0.0
    %94 = vadd.xlane.f32.xlu0 %v93
    %v95 = vpop.xlane.xlu0 %94
    %v96 = vsel %vm73, %v92, 0.0
    %97 = vadd.xlane.f32.xlu0 %v96
    %v98 = vpop.xlane.xlu0 %97
    %v99 = vmul.f32 %v95, %v86
    %v100 = vmul.f32 %v98, %v86
    %v101 = vadd.f32 %v99, 1e-05
    %v102 = vadd.f32 %v100, 1e-05
    %v103 = vrsqrt.pop %v101
    %v104 = vmul.f32 %v103, %v101
    %v105 = vmul.f32 %v104, %v103
    %v106 = vmul.f32 0.5, %v105
    %v107 = vsub.f32 1.5, %v106
    %v108 = vmul.f32 %v103, %v107
    %vm109 = vweird.f32 %v101
    %vm110 = vweird.f32 %v103
    %vm111 = vmor %vm109, %vm110
    %v112 = vsel %vm111, %v103, %v108
    %v113 = vrsqrt.pop %v102
    %v114 = vmul.f32 %v113, %v102
    %v115 = vmul.f32 %v114, %v113
    %v116 = vmul.f32 0.5, %v115
    %v117 = vsub.f32 1.5, %v116
    %v118 = vmul.f32 %v113, %v117
    %vm119 = vweird.f32 %v102
    %vm120 = vweird.f32 %v113
    %vm121 = vmor %vm119, %vm120
    %v122 = vsel %vm121, %v113, %v118
    %v123 = vmul.f32 %v89, %v112
    %v124 = vmul.f32 %v90, %v122
    %v125 = vperm.slane %v65, 0
    %v126 = vmul.f32 %v123, %v125
    %v127 = vmul.f32 %v124, %v125
    %v128 = vperm.slane %v66, 0
    %v129 = vadd.f32 %v126, %v128
    %v130 = vadd.f32 %v127, %v128
    %v131 = vperm.slane %v61, 0
    %v133 = vsel %vm73, %v129, 0
    %v136 = vsel %vm73, %v130, 0
    %138 = vmatpush.msra.mxu0 0.0
    %139 = vmatpush.msra.mxu0 0.0
    %140 = vmatpush.msra.mxu0 0.0
    %141 = vmatpush.msra.mxu0 0.0
    %142 = vmatpush.msra.mxu0 0.0
    %143 = vmatpush.msra.mxu0 0.0
    %144 = vmatpush.msra.mxu0 0.0
    %145 = vmatpush.msra.mxu0 0.0
    %146 = vmatpush.msra.mxu0 0.0
    %147 = vmatpush.msra.mxu0 0.0
    %148 = vmatpush.msra.mxu0 0.0
    %149 = vmatpush.msra.mxu0 0.0
    %150 = vmatpush.msra.mxu0 %v48
    %151 = vmatpush.msra.mxu0 %v47
    %152 = vmatpush.msra.mxu0 %v46
    %153 = vmatpush.msra.mxu0 %v45
    %154 = vmatmul.f32.gmra.mxu0 %v133
    %v155 = vpop.f32.mrf.mxu0
    %v156 = vadd.f32 %v131, %v155
    %157 = vmatmul.f32.gmra.mxu0 %v136
    %v158 = vpop.f32.mrf.mxu0
    %v159 = vadd.f32 %v131, %v158
    %160 = vdwg.mxu0
    %v161 = vperm.slane %v62, 0
    %166 = vrot.lane.b32.xlu0 %v45, 96
    %v167 = vpop.permute.xlu0 %166
    %168 = vrot.lane.b32.xlu0 %v46, 96
    %v169 = vpop.permute.xlu0 %168
    %170 = vrot.lane.b32.xlu0 %v47, 96
    %v171 = vpop.permute.xlu0 %170
    %172 = vrot.lane.b32.xlu0 %v48, 96
    %v173 = vpop.permute.xlu0 %172
    %178 = vmatpush.msra.mxu0 0.0
    %179 = vmatpush.msra.mxu0 0.0
    %180 = vmatpush.msra.mxu0 0.0
    %181 = vmatpush.msra.mxu0 0.0
    %182 = vmatpush.msra.mxu0 0.0
    %183 = vmatpush.msra.mxu0 0.0
    %184 = vmatpush.msra.mxu0 0.0
    %185 = vmatpush.msra.mxu0 0.0
    %186 = vmatpush.msra.mxu0 0.0
    %187 = vmatpush.msra.mxu0 0.0
    %188 = vmatpush.msra.mxu0 0.0
    %189 = vmatpush.msra.mxu0 0.0
    %190 = vmatpush.msra.mxu0 %v173
    %191 = vmatpush.msra.mxu0 %v171
    %192 = vmatpush.msra.mxu0 %v169
    %193 = vmatpush.msra.mxu0 %v167
    %194 = vmatmul.f32.gmra.mxu0 %v133
    %v195 = vpop.f32.mrf.mxu0
    %v196 = vadd.f32 %v161, %v195
    %197 = vmatmul.f32.gmra.mxu0 %v136
    %v198 = vpop.f32.mrf.mxu0
    %v199 = vadd.f32 %v161, %v198
    %200 = vdwg.mxu0
    %v201 = vperm.slane %v63, 0
    %202 = vrot.lane.b32.xlu0 %v45, 64
    %v203 = vpop.permute.xlu0 %202
    %204 = vrot.lane.b32.xlu0 %v46, 64
    %v205 = vpop.permute.xlu0 %204
    %206 = vrot.lane.b32.xlu0 %v47, 64
    %v207 = vpop.permute.xlu0 %206
    %208 = vrot.lane.b32.xlu0 %v48, 64
    %v209 = vpop.permute.xlu0 %208
    %214 = vmatpush.msra.mxu0 0.0
    %215 = vmatpush.msra.mxu0 0.0
    %216 = vmatpush.msra.mxu0 0.0
    %217 = vmatpush.msra.mxu0 0.0
    %218 = vmatpush.msra.mxu0 0.0
    %219 = vmatpush.msra.mxu0 0.0
    %220 = vmatpush.msra.mxu0 0.0
    %221 = vmatpush.msra.mxu0 0.0
    %222 = vmatpush.msra.mxu0 0.0
    %223 = vmatpush.msra.mxu0 0.0
    %224 = vmatpush.msra.mxu0 0.0
    %225 = vmatpush.msra.mxu0 0.0
    %226 = vmatpush.msra.mxu0 %v209
    %227 = vmatpush.msra.mxu0 %v207
    %228 = vmatpush.msra.mxu0 %v205
    %229 = vmatpush.msra.mxu0 %v203
    %230 = vmatmul.f32.gmra.mxu0 %v133
    %v231 = vpop.f32.mrf.mxu0
    %v232 = vadd.f32 %v201, %v231
    %233 = vmatmul.f32.gmra.mxu0 %v136
    %v234 = vpop.f32.mrf.mxu0
    %v235 = vadd.f32 %v201, %v234
    %236 = vdwg.mxu0
    %vm237 = vcmask 64512
    %v239 = vsel %vm237, %v156, 0
    %v242 = vsel %vm237, %v196, 0
    %244 = vmatpush.xpose.msra.mxu0 0.0
    %245 = vmatpush.xpose.msra.mxu0 0.0
    %246 = vmatpush.xpose.msra.mxu0 0.0
    %247 = vmatpush.xpose.msra.mxu0 0.0
    %248 = vmatpush.xpose.msra.mxu0 0.0
    %249 = vmatpush.xpose.msra.mxu0 0.0
    %250 = vmatpush.xpose.msra.mxu0 0.0
    %251 = vmatpush.xpose.msra.mxu0 0.0
    %252 = vmatpush.xpose.msra.mxu0 0.0
    %253 = vmatpush.xpose.msra.mxu0 0.0
    %254 = vmatpush.xpose.msra.mxu0 0.0
    %255 = vmatpush.xpose.msra.mxu0 0.0
    %256 = vmatpush.xpose.msra.mxu0 0.0
    %257 = vmatpush.xpose.msra.mxu0 0.0
    %258 = vmatpush.xpose.msra.mxu0 0.0
    %259 = vmatpush.xpose.msra.mxu0 %v242
    %260 = vmatmul.f32.gmra.mxu0 %v239
    %v261 = vpop.f32.mrf.mxu0
    %v262 = vadd.f32 0.0, %v261
    %263 = vdwg.mxu0
    %v265 = vsel %vm237, %v159, 0
    %v268 = vsel %vm237, %v199, 0
    %270 = vmatpush.xpose.msra.mxu0 0.0
    %271 = vmatpush.xpose.msra.mxu0 0.0
    %272 = vmatpush.xpose.msra.mxu0 0.0
    %273 = vmatpush.xpose.msra.mxu0 0.0
    %274 = vmatpush.xpose.msra.mxu0 0.0
    %275 = vmatpush.xpose.msra.mxu0 0.0
    %276 = vmatpush.xpose.msra.mxu0 0.0
    %277 = vmatpush.xpose.msra.mxu0 0.0
    %278 = vmatpush.xpose.msra.mxu0 0.0
    %279 = vmatpush.xpose.msra.mxu0 0.0
    %280 = vmatpush.xpose.msra.mxu0 0.0
    %281 = vmatpush.xpose.msra.mxu0 0.0
    %282 = vmatpush.xpose.msra.mxu0 0.0
    %283 = vmatpush.xpose.msra.mxu0 0.0
    %284 = vmatpush.xpose.msra.mxu0 0.0
    %285 = vmatpush.xpose.msra.mxu0 %v268
    %286 = vmatmul.f32.gmra.mxu0 %v265
    %v287 = vpop.f32.mrf.mxu0
    %v288 = vadd.f32 0.0, %v287
    %289 = vdwg.mxu0
    %v290 = vmul.f32 %v262, 0.35355338
    %v291 = vmul.f32 %v288, 0.35355338
    %v292 = vadd.f32 %v290, %v43
    %v293 = vadd.f32 %v291, %v44
    %v294 = vsel %vm237, %v292, -inf
    %295 = vmax.xlane.f32.xlu0 %v294
    %v296 = vpop.xlane.xlu0 %295
    %v297 = vsel %vm237, %v293, -inf
    %298 = vmax.xlane.f32.xlu0 %v297
    %v299 = vpop.xlane.xlu0 %298
    %v300 = vsub.f32 %v292, %v296
    %v301 = vsub.f32 %v293, %v299
    %v302 = vmul.f32 %v300, 1.442695
    %v303 = vpow.pop %v302
    %v304 = vmul.f32 %v301, 1.442695
    %v305 = vpow.pop %v304
    %v306 = vsel %vm237, %v303, 0.0
    %307 = vadd.xlane.f32.xlu0 %v306
    %v308 = vpop.xlane.xlu0 %307
    %v309 = vsel %vm237, %v305, 0.0
    %310 = vadd.xlane.f32.xlu0 %v309
    %v311 = vpop.xlane.xlu0 %310
    %v312 = vrcp.pop %v308
    %v313 = vrcp.pop %v311
    %v314 = vmul.f32 %v303, %v312
    %v315 = vmul.f32 %v305, %v313
    %v317 = vsel %vm237, %v314, 0
    %319 = vmatpush.msra.mxu0 0.0
    %320 = vmatpush.msra.mxu0 0.0
    %321 = vmatpush.msra.mxu0 0.0
    %322 = vmatpush.msra.mxu0 0.0
    %323 = vmatpush.msra.mxu0 0.0
    %324 = vmatpush.msra.mxu0 0.0
    %325 = vmatpush.msra.mxu0 0.0
    %326 = vmatpush.msra.mxu0 0.0
    %327 = vmatpush.msra.mxu0 0.0
    %328 = vmatpush.msra.mxu0 0.0
    %329 = vmatpush.msra.mxu0 0.0
    %330 = vmatpush.msra.mxu0 0.0
    %331 = vmatpush.msra.mxu0 0.0
    %332 = vmatpush.msra.mxu0 0.0
    %333 = vmatpush.msra.mxu0 0.0
    %334 = vmatpush.msra.mxu0 %v232
    %335 = vmatmul.f32.gmra.mxu0 %v317
    %v336 = vpop.f32.mrf.mxu0
    %v337 = vadd.f32 0.0, %v336
    %338 = vdwg.mxu0
    %v340 = vsel %vm237, %v315, 0
    %342 = vmatpush.msra.mxu0 0.0
    %343 = vmatpush.msra.mxu0 0.0
    %344 = vmatpush.msra.mxu0 0.0
    %345 = vmatpush.msra.mxu0 0.0
    %346 = vmatpush.msra.mxu0 0.0
    %347 = vmatpush.msra.mxu0 0.0
    %348 = vmatpush.msra.mxu0 0.0
    %349 = vmatpush.msra.mxu0 0.0
    %350 = vmatpush.msra.mxu0 0.0
    %351 = vmatpush.msra.mxu0 0.0
    %352 = vmatpush.msra.mxu0 0.0
    %353 = vmatpush.msra.mxu0 0.0
    %354 = vmatpush.msra.mxu0 0.0
    %355 = vmatpush.msra.mxu0 0.0
    %356 = vmatpush.msra.mxu0 0.0
    %357 = vmatpush.msra.mxu0 %v235
    %358 = vmatmul.f32.gmra.mxu0 %v340
    %v359 = vpop.f32.mrf.mxu0
    %v360 = vadd.f32 0.0, %v359
    %361 = vdwg.mxu0
    %362 = vrot.lane.b32.xlu0 %v156, 120
    %v363 = vpop.permute.xlu0 %362
    %364 = vrot.lane.b32.xlu0 %v196, 120
    %v365 = vpop.permute.xlu0 %364
    %v366 = vsel %vm237, %v363, 0
    %v368 = vsel %vm237, %v365, 0
    %370 = vmatpush.xpose.msra.mxu0 0.0
    %371 = vmatpush.xpose.msra.mxu0 0.0
    %372 = vmatpush.xpose.msra.mxu0 0.0
    %373 = vmatpush.xpose.msra.mxu0 0.0
    %374 = vmatpush.xpose.msra.mxu0 0.0
    %375 = vmatpush.xpose.msra.mxu0 0.0
    %376 = vmatpush.xpose.msra.mxu0 0.0
    %377 = vmatpush.xpose.msra.mxu0 0.0
    %378 = vmatpush.xpose.msra.mxu0 0.0
    %379 = vmatpush.xpose.msra.mxu0 0.0
    %380 = vmatpush.xpose.msra.mxu0 0.0
    %381 = vmatpush.xpose.msra.mxu0 0.0
    %382 = vmatpush.xpose.msra.mxu0 0.0
    %383 = vmatpush.xpose.msra.mxu0 0.0
    %384 = vmatpush.xpose.msra.mxu0 0.0
    %385 = vmatpush.xpose.msra.mxu0 %v368
    %386 = vmatmul.f32.gmra.mxu0 %v366
    %v387 = vpop.f32.mrf.mxu0
    %v388 = vadd.f32 0.0, %v387
    %389 = vdwg.mxu0
    %390 = vrot.lane.b32.xlu0 %v159, 120
    %v391 = vpop.permute.xlu0 %390
    %392 = vrot.lane.b32.xlu0 %v199, 120
    %v393 = vpop.permute.xlu0 %392
    %v394 = vsel %vm237, %v391, 0
    %v396 = vsel %vm237, %v393, 0
    %398 = vmatpush.xpose.msra.mxu0 0.0
    %399 = vmatpush.xpose.msra.mxu0 0.0
    %400 = vmatpush.xpose.msra.mxu0 0.0
    %401 = vmatpush.xpose.msra.mxu0 0.0
    %402 = vmatpush.xpose.msra.mxu0 0.0
    %403 = vmatpush.xpose.msra.mxu0 0.0
    %404 = vmatpush.xpose.msra.mxu0 0.0
    %405 = vmatpush.xpose.msra.mxu0 0.0
    %406 = vmatpush.xpose.msra.mxu0 0.0
    %407 = vmatpush.xpose.msra.mxu0 0.0
    %408 = vmatpush.xpose.msra.mxu0 0.0
    %409 = vmatpush.xpose.msra.mxu0 0.0
    %410 = vmatpush.xpose.msra.mxu0 0.0
    %411 = vmatpush.xpose.msra.mxu0 0.0
    %412 = vmatpush.xpose.msra.mxu0 0.0
    %413 = vmatpush.xpose.msra.mxu0 %v396
    %414 = vmatmul.f32.gmra.mxu0 %v394
    %v415 = vpop.f32.mrf.mxu0
    %v416 = vadd.f32 0.0, %v415
    %417 = vdwg.mxu0
    %v418 = vmul.f32 %v388, 0.35355338
    %v419 = vmul.f32 %v416, 0.35355338
    %v420 = vadd.f32 %v418, %v43
    %v421 = vadd.f32 %v419, %v44
    %v422 = vsel %vm237, %v420, -inf
    %423 = vmax.xlane.f32.xlu0 %v422
    %v424 = vpop.xlane.xlu0 %423
    %v425 = vsel %vm237, %v421, -inf
    %426 = vmax.xlane.f32.xlu0 %v425
    %v427 = vpop.xlane.xlu0 %426
    %v428 = vsub.f32 %v420, %v424
    %v429 = vsub.f32 %v421, %v427
    %v430 = vmul.f32 %v428, 1.442695
    %v431 = vpow.pop %v430
    %v432 = vmul.f32 %v429, 1.442695
    %v433 = vpow.pop %v432
    %v434 = vsel %vm237, %v431, 0.0
    %435 = vadd.xlane.f32.xlu0 %v434
    %v436 = vpop.xlane.xlu0 %435
    %v437 = vsel %vm237, %v433, 0.0
    %438 = vadd.xlane.f32.xlu0 %v437
    %v439 = vpop.xlane.xlu0 %438
    %v440 = vrcp.pop %v436
    %v441 = vrcp.pop %v439
    %v442 = vmul.f32 %v431, %v440
    %v443 = vmul.f32 %v433, %v441
    %445 = vrot.lane.b32.xlu0 %v232, 120
    %v446 = vpop.permute.xlu0 %445
    %v449 = vsel %vm237, %v442, 0
    %451 = vmatpush.msra.mxu0 0.0
    %452 = vmatpush.msra.mxu0 0.0
    %453 = vmatpush.msra.mxu0 0.0
    %454 = vmatpush.msra.mxu0 0.0
    %455 = vmatpush.msra.mxu0 0.0
    %456 = vmatpush.msra.mxu0 0.0
    %457 = vmatpush.msra.mxu0 0.0
    %458 = vmatpush.msra.mxu0 0.0
    %459 = vmatpush.msra.mxu0 0.0
    %460 = vmatpush.msra.mxu0 0.0
    %461 = vmatpush.msra.mxu0 0.0
    %462 = vmatpush.msra.mxu0 0.0
    %463 = vmatpush.msra.mxu0 0.0
    %464 = vmatpush.msra.mxu0 0.0
    %465 = vmatpush.msra.mxu0 0.0
    %466 = vmatpush.msra.mxu0 %v446
    %467 = vmatmul.f32.gmra.mxu0 %v449
    %v468 = vpop.f32.mrf.mxu0
    %v469 = vadd.f32 0.0, %v468
    %470 = vdwg.mxu0
    %472 = vrot.lane.b32.xlu0 %v235, 120
    %v473 = vpop.permute.xlu0 %472
    %v476 = vsel %vm237, %v443, 0
    %478 = vmatpush.msra.mxu0 0.0
    %479 = vmatpush.msra.mxu0 0.0
    %480 = vmatpush.msra.mxu0 0.0
    %481 = vmatpush.msra.mxu0 0.0
    %482 = vmatpush.msra.mxu0 0.0
    %483 = vmatpush.msra.mxu0 0.0
    %484 = vmatpush.msra.mxu0 0.0
    %485 = vmatpush.msra.mxu0 0.0
    %486 = vmatpush.msra.mxu0 0.0
    %487 = vmatpush.msra.mxu0 0.0
    %488 = vmatpush.msra.mxu0 0.0
    %489 = vmatpush.msra.mxu0 0.0
    %490 = vmatpush.msra.mxu0 0.0
    %491 = vmatpush.msra.mxu0 0.0
    %492 = vmatpush.msra.mxu0 0.0
    %493 = vmatpush.msra.mxu0 %v473
    %494 = vmatmul.f32.gmra.mxu0 %v476
    %v495 = vpop.f32.mrf.mxu0
    %v496 = vadd.f32 0.0, %v495
    %497 = vdwg.mxu0
    %498 = vrot.lane.b32.xlu0 %v46, 32
    %v499 = vpop.permute.xlu0 %498
    %v502 = vsel %vm237, %v469, 0
    %v505 = vsel %vm237, %v496, 0
    %507 = vmatpush.msra.mxu0 0.0
    %508 = vmatpush.msra.mxu0 0.0
    %509 = vmatpush.msra.mxu0 0.0
    %510 = vmatpush.msra.mxu0 0.0
    %511 = vmatpush.msra.mxu0 0.0
    %512 = vmatpush.msra.mxu0 0.0
    %513 = vmatpush.msra.mxu0 0.0
    %514 = vmatpush.msra.mxu0 0.0
    %515 = vmatpush.msra.mxu0 0.0
    %516 = vmatpush.msra.mxu0 0.0
    %517 = vmatpush.msra.mxu0 0.0
    %518 = vmatpush.msra.mxu0 0.0
    %519 = vmatpush.msra.mxu0 0.0
    %520 = vmatpush.msra.mxu0 0.0
    %521 = vmatpush.msra.mxu0 0.0
    %522 = vmatpush.msra.mxu0 %v499
    %523 = vmatmul.f32.gmra.mxu0 %v502
    %v524 = vpop.f32.mrf.mxu0
    %v525 = vadd.f32 0.0, %v524
    %526 = vmatmul.f32.gmra.mxu0 %v505
    %v527 = vpop.f32.mrf.mxu0
    %v528 = vadd.f32 0.0, %v527
    %529 = vdwg.mxu0
    %530 = vrot.lane.b32.xlu0 %v45, 32
    %v531 = vpop.permute.xlu0 %530
    %v534 = vsel %vm237, %v337, 0
    %v537 = vsel %vm237, %v360, 0
    %539 = vmatpush.msra.mxu0 0.0
    %540 = vmatpush.msra.mxu0 0.0
    %541 = vmatpush.msra.mxu0 0.0
    %542 = vmatpush.msra.mxu0 0.0
    %543 = vmatpush.msra.mxu0 0.0
    %544 = vmatpush.msra.mxu0 0.0
    %545 = vmatpush.msra.mxu0 0.0
    %546 = vmatpush.msra.mxu0 0.0
    %547 = vmatpush.msra.mxu0 0.0
    %548 = vmatpush.msra.mxu0 0.0
    %549 = vmatpush.msra.mxu0 0.0
    %550 = vmatpush.msra.mxu0 0.0
    %551 = vmatpush.msra.mxu0 0.0
    %552 = vmatpush.msra.mxu0 0.0
    %553 = vmatpush.msra.mxu0 0.0
    %554 = vmatpush.msra.mxu0 %v531
    %555 = vmatmul.f32.gmra.mxu0 %v534
    %v556 = vpop.f32.mrf.mxu0
    %v557 = vadd.f32 %v525, %v556
    %558 = vmatmul.f32.gmra.mxu0 %v537
    %v559 = vpop.f32.mrf.mxu0
    %v560 = vadd.f32 %v528, %v559
    %561 = vdwg.mxu0
    %562 = vrot.lane.b32.xlu0 %v156, 112
    %v563 = vpop.permute.xlu0 %562
    %564 = vrot.lane.b32.xlu0 %v196, 112
    %v565 = vpop.permute.xlu0 %564
    %v566 = vsel %vm237, %v563, 0
    %v568 = vsel %vm237, %v565, 0
    %570 = vmatpush.xpose.msra.mxu0 0.0
    %571 = vmatpush.xpose.msra.mxu0 0.0
    %572 = vmatpush.xpose.msra.mxu0 0.0
    %573 = vmatpush.xpose.msra.mxu0 0.0
    %574 = vmatpush.xpose.msra.mxu0 0.0
    %575 = vmatpush.xpose.msra.mxu0 0.0
    %576 = vmatpush.xpose.msra.mxu0 0.0
    %577 = vmatpush.xpose.msra.mxu0 0.0
    %578 = vmatpush.xpose.msra.mxu0 0.0
    %579 = vmatpush.xpose.msra.mxu0 0.0
    %580 = vmatpush.xpose.msra.mxu0 0.0
    %581 = vmatpush.xpose.msra.mxu0 0.0
    %582 = vmatpush.xpose.msra.mxu0 0.0
    %583 = vmatpush.xpose.msra.mxu0 0.0
    %584 = vmatpush.xpose.msra.mxu0 0.0
    %585 = vmatpush.xpose.msra.mxu0 %v568
    %586 = vmatmul.f32.gmra.mxu0 %v566
    %v587 = vpop.f32.mrf.mxu0
    %v588 = vadd.f32 0.0, %v587
    %589 = vdwg.mxu0
    %590 = vrot.lane.b32.xlu0 %v159, 112
    %v591 = vpop.permute.xlu0 %590
    %592 = vrot.lane.b32.xlu0 %v199, 112
    %v593 = vpop.permute.xlu0 %592
    %v594 = vsel %vm237, %v591, 0
    %v596 = vsel %vm237, %v593, 0
    %598 = vmatpush.xpose.msra.mxu0 0.0
    %599 = vmatpush.xpose.msra.mxu0 0.0
    %600 = vmatpush.xpose.msra.mxu0 0.0
    %601 = vmatpush.xpose.msra.mxu0 0.0
    %602 = vmatpush.xpose.msra.mxu0 0.0
    %603 = vmatpush.xpose.msra.mxu0 0.0
    %604 = vmatpush.xpose.msra.mxu0 0.0
    %605 = vmatpush.xpose.msra.mxu0 0.0
    %606 = vmatpush.xpose.msra.mxu0 0.0
    %607 = vmatpush.xpose.msra.mxu0 0.0
    %608 = vmatpush.xpose.msra.mxu0 0.0
    %609 = vmatpush.xpose.msra.mxu0 0.0
    %610 = vmatpush.xpose.msra.mxu0 0.0
    %611 = vmatpush.xpose.msra.mxu0 0.0
    %612 = vmatpush.xpose.msra.mxu0 0.0
    %613 = vmatpush.xpose.msra.mxu0 %v596
    %614 = vmatmul.f32.gmra.mxu0 %v594
    %v615 = vpop.f32.mrf.mxu0
    %v616 = vadd.f32 0.0, %v615
    %617 = vdwg.mxu0
    %v618 = vmul.f32 %v588, 0.35355338
    %v619 = vmul.f32 %v616, 0.35355338
    %v620 = vadd.f32 %v618, %v43
    %v621 = vadd.f32 %v619, %v44
    %v622 = vsel %vm237, %v620, -inf
    %623 = vmax.xlane.f32.xlu0 %v622
    %v624 = vpop.xlane.xlu0 %623
    %v625 = vsel %vm237, %v621, -inf
    %626 = vmax.xlane.f32.xlu0 %v625
    %v627 = vpop.xlane.xlu0 %626
    %v628 = vsub.f32 %v620, %v624
    %v629 = vsub.f32 %v621, %v627
    %v630 = vmul.f32 %v628, 1.442695
    %v631 = vpow.pop %v630
    %v632 = vmul.f32 %v629, 1.442695
    %v633 = vpow.pop %v632
    %v634 = vsel %vm237, %v631, 0.0
    %635 = vadd.xlane.f32.xlu0 %v634
    %v636 = vpop.xlane.xlu0 %635
    %v637 = vsel %vm237, %v633, 0.0
    %638 = vadd.xlane.f32.xlu0 %v637
    %v639 = vpop.xlane.xlu0 %638
    %v640 = vrcp.pop %v636
    %v641 = vrcp.pop %v639
    %v642 = vmul.f32 %v631, %v640
    %v643 = vmul.f32 %v633, %v641
    %644 = vrot.lane.b32.xlu0 %v232, 112
    %v645 = vpop.permute.xlu0 %644
    %v648 = vsel %vm237, %v642, 0
    %650 = vmatpush.msra.mxu0 0.0
    %651 = vmatpush.msra.mxu0 0.0
    %652 = vmatpush.msra.mxu0 0.0
    %653 = vmatpush.msra.mxu0 0.0
    %654 = vmatpush.msra.mxu0 0.0
    %655 = vmatpush.msra.mxu0 0.0
    %656 = vmatpush.msra.mxu0 0.0
    %657 = vmatpush.msra.mxu0 0.0
    %658 = vmatpush.msra.mxu0 0.0
    %659 = vmatpush.msra.mxu0 0.0
    %660 = vmatpush.msra.mxu0 0.0
    %661 = vmatpush.msra.mxu0 0.0
    %662 = vmatpush.msra.mxu0 0.0
    %663 = vmatpush.msra.mxu0 0.0
    %664 = vmatpush.msra.mxu0 0.0
    %665 = vmatpush.msra.mxu0 %v645
    %666 = vmatmul.f32.gmra.mxu0 %v648
    %v667 = vpop.f32.mrf.mxu0
    %v668 = vadd.f32 0.0, %v667
    %669 = vdwg.mxu0
    %670 = vrot.lane.b32.xlu0 %v235, 112
    %v671 = vpop.permute.xlu0 %670
    %v674 = vsel %vm237, %v643, 0
    %676 = vmatpush.msra.mxu0 0.0
    %677 = vmatpush.msra.mxu0 0.0
    %678 = vmatpush.msra.mxu0 0.0
    %679 = vmatpush.msra.mxu0 0.0
    %680 = vmatpush.msra.mxu0 0.0
    %681 = vmatpush.msra.mxu0 0.0
    %682 = vmatpush.msra.mxu0 0.0
    %683 = vmatpush.msra.mxu0 0.0
    %684 = vmatpush.msra.mxu0 0.0
    %685 = vmatpush.msra.mxu0 0.0
    %686 = vmatpush.msra.mxu0 0.0
    %687 = vmatpush.msra.mxu0 0.0
    %688 = vmatpush.msra.mxu0 0.0
    %689 = vmatpush.msra.mxu0 0.0
    %690 = vmatpush.msra.mxu0 0.0
    %691 = vmatpush.msra.mxu0 %v671
    %692 = vmatmul.f32.gmra.mxu0 %v674
    %v693 = vpop.f32.mrf.mxu0
    %v694 = vadd.f32 0.0, %v693
    %695 = vdwg.mxu0
    %696 = vrot.lane.b32.xlu0 %v47, 32
    %v697 = vpop.permute.xlu0 %696
    %v700 = vsel %vm237, %v668, 0
    %v703 = vsel %vm237, %v694, 0
    %705 = vmatpush.msra.mxu0 0.0
    %706 = vmatpush.msra.mxu0 0.0
    %707 = vmatpush.msra.mxu0 0.0
    %708 = vmatpush.msra.mxu0 0.0
    %709 = vmatpush.msra.mxu0 0.0
    %710 = vmatpush.msra.mxu0 0.0
    %711 = vmatpush.msra.mxu0 0.0
    %712 = vmatpush.msra.mxu0 0.0
    %713 = vmatpush.msra.mxu0 0.0
    %714 = vmatpush.msra.mxu0 0.0
    %715 = vmatpush.msra.mxu0 0.0
    %716 = vmatpush.msra.mxu0 0.0
    %717 = vmatpush.msra.mxu0 0.0
    %718 = vmatpush.msra.mxu0 0.0
    %719 = vmatpush.msra.mxu0 0.0
    %720 = vmatpush.msra.mxu0 %v697
    %721 = vmatmul.f32.gmra.mxu0 %v700
    %v722 = vpop.f32.mrf.mxu0
    %v723 = vadd.f32 0.0, %v722
    %724 = vmatmul.f32.gmra.mxu0 %v703
    %v725 = vpop.f32.mrf.mxu0
    %v726 = vadd.f32 0.0, %v725
    %727 = vdwg.mxu0
    %v728 = vadd.f32 %v557, %v723
    %v729 = vadd.f32 %v560, %v726
    %730 = vrot.lane.b32.xlu0 %v156, 104
    %v731 = vpop.permute.xlu0 %730
    %732 = vrot.lane.b32.xlu0 %v196, 104
    %v733 = vpop.permute.xlu0 %732
    %v734 = vsel %vm237, %v731, 0
    %v736 = vsel %vm237, %v733, 0
    %738 = vmatpush.xpose.msra.mxu0 0.0
    %739 = vmatpush.xpose.msra.mxu0 0.0
    %740 = vmatpush.xpose.msra.mxu0 0.0
    %741 = vmatpush.xpose.msra.mxu0 0.0
    %742 = vmatpush.xpose.msra.mxu0 0.0
    %743 = vmatpush.xpose.msra.mxu0 0.0
    %744 = vmatpush.xpose.msra.mxu0 0.0
    %745 = vmatpush.xpose.msra.mxu0 0.0
    %746 = vmatpush.xpose.msra.mxu0 0.0
    %747 = vmatpush.xpose.msra.mxu0 0.0
    %748 = vmatpush.xpose.msra.mxu0 0.0
    %749 = vmatpush.xpose.msra.mxu0 0.0
    %750 = vmatpush.xpose.msra.mxu0 0.0
    %751 = vmatpush.xpose.msra.mxu0 0.0
    %752 = vmatpush.xpose.msra.mxu0 0.0
    %753 = vmatpush.xpose.msra.mxu0 %v736
    %754 = vmatmul.f32.gmra.mxu0 %v734
    %v755 = vpop.f32.mrf.mxu0
    %v756 = vadd.f32 0.0, %v755
    %757 = vdwg.mxu0
    %758 = vrot.lane.b32.xlu0 %v159, 104
    %v759 = vpop.permute.xlu0 %758
    %760 = vrot.lane.b32.xlu0 %v199, 104
    %v761 = vpop.permute.xlu0 %760
    %v762 = vsel %vm237, %v759, 0
    %v764 = vsel %vm237, %v761, 0
    %766 = vmatpush.xpose.msra.mxu0 0.0
    %767 = vmatpush.xpose.msra.mxu0 0.0
    %768 = vmatpush.xpose.msra.mxu0 0.0
    %769 = vmatpush.xpose.msra.mxu0 0.0
    %770 = vmatpush.xpose.msra.mxu0 0.0
    %771 = vmatpush.xpose.msra.mxu0 0.0
    %772 = vmatpush.xpose.msra.mxu0 0.0
    %773 = vmatpush.xpose.msra.mxu0 0.0
    %774 = vmatpush.xpose.msra.mxu0 0.0
    %775 = vmatpush.xpose.msra.mxu0 0.0
    %776 = vmatpush.xpose.msra.mxu0 0.0
    %777 = vmatpush.xpose.msra.mxu0 0.0
    %778 = vmatpush.xpose.msra.mxu0 0.0
    %779 = vmatpush.xpose.msra.mxu0 0.0
    %780 = vmatpush.xpose.msra.mxu0 0.0
    %781 = vmatpush.xpose.msra.mxu0 %v764
    %782 = vmatmul.f32.gmra.mxu0 %v762
    %v783 = vpop.f32.mrf.mxu0
    %v784 = vadd.f32 0.0, %v783
    %785 = vdwg.mxu0
    %v786 = vmul.f32 %v756, 0.35355338
    %v787 = vmul.f32 %v784, 0.35355338
    %v788 = vadd.f32 %v786, %v43
    %v789 = vadd.f32 %v787, %v44
    %v790 = vsel %vm237, %v788, -inf
    %791 = vmax.xlane.f32.xlu0 %v790
    %v792 = vpop.xlane.xlu0 %791
    %v793 = vsel %vm237, %v789, -inf
    %794 = vmax.xlane.f32.xlu0 %v793
    %v795 = vpop.xlane.xlu0 %794
    %v796 = vsub.f32 %v788, %v792
    %v797 = vsub.f32 %v789, %v795
    %v798 = vmul.f32 %v796, 1.442695
    %v799 = vpow.pop %v798
    %v800 = vmul.f32 %v797, 1.442695
    %v801 = vpow.pop %v800
    %v802 = vsel %vm237, %v799, 0.0
    %803 = vadd.xlane.f32.xlu0 %v802
    %v804 = vpop.xlane.xlu0 %803
    %v805 = vsel %vm237, %v801, 0.0
    %806 = vadd.xlane.f32.xlu0 %v805
    %v807 = vpop.xlane.xlu0 %806
    %v808 = vrcp.pop %v804
    %v809 = vrcp.pop %v807
    %v810 = vmul.f32 %v799, %v808
    %v811 = vmul.f32 %v801, %v809
    %812 = vrot.lane.b32.xlu0 %v232, 104
    %v813 = vpop.permute.xlu0 %812
    %v816 = vsel %vm237, %v810, 0
    %818 = vmatpush.msra.mxu0 0.0
    %819 = vmatpush.msra.mxu0 0.0
    %820 = vmatpush.msra.mxu0 0.0
    %821 = vmatpush.msra.mxu0 0.0
    %822 = vmatpush.msra.mxu0 0.0
    %823 = vmatpush.msra.mxu0 0.0
    %824 = vmatpush.msra.mxu0 0.0
    %825 = vmatpush.msra.mxu0 0.0
    %826 = vmatpush.msra.mxu0 0.0
    %827 = vmatpush.msra.mxu0 0.0
    %828 = vmatpush.msra.mxu0 0.0
    %829 = vmatpush.msra.mxu0 0.0
    %830 = vmatpush.msra.mxu0 0.0
    %831 = vmatpush.msra.mxu0 0.0
    %832 = vmatpush.msra.mxu0 0.0
    %833 = vmatpush.msra.mxu0 %v813
    %834 = vmatmul.f32.gmra.mxu0 %v816
    %v835 = vpop.f32.mrf.mxu0
    %v836 = vadd.f32 0.0, %v835
    %837 = vdwg.mxu0
    %838 = vrot.lane.b32.xlu0 %v235, 104
    %v839 = vpop.permute.xlu0 %838
    %v842 = vsel %vm237, %v811, 0
    %844 = vmatpush.msra.mxu0 0.0
    %845 = vmatpush.msra.mxu0 0.0
    %846 = vmatpush.msra.mxu0 0.0
    %847 = vmatpush.msra.mxu0 0.0
    %848 = vmatpush.msra.mxu0 0.0
    %849 = vmatpush.msra.mxu0 0.0
    %850 = vmatpush.msra.mxu0 0.0
    %851 = vmatpush.msra.mxu0 0.0
    %852 = vmatpush.msra.mxu0 0.0
    %853 = vmatpush.msra.mxu0 0.0
    %854 = vmatpush.msra.mxu0 0.0
    %855 = vmatpush.msra.mxu0 0.0
    %856 = vmatpush.msra.mxu0 0.0
    %857 = vmatpush.msra.mxu0 0.0
    %858 = vmatpush.msra.mxu0 0.0
    %859 = vmatpush.msra.mxu0 %v839
    %860 = vmatmul.f32.gmra.mxu0 %v842
    %v861 = vpop.f32.mrf.mxu0
    %v862 = vadd.f32 0.0, %v861
    %863 = vdwg.mxu0
    %864 = vrot.lane.b32.xlu0 %v48, 32
    %v865 = vpop.permute.xlu0 %864
    %v868 = vsel %vm237, %v836, 0
    %v871 = vsel %vm237, %v862, 0
    %873 = vmatpush.msra.mxu0 0.0
    %874 = vmatpush.msra.mxu0 0.0
    %875 = vmatpush.msra.mxu0 0.0
    %876 = vmatpush.msra.mxu0 0.0
    %877 = vmatpush.msra.mxu0 0.0
    %878 = vmatpush.msra.mxu0 0.0
    %879 = vmatpush.msra.mxu0 0.0
    %880 = vmatpush.msra.mxu0 0.0
    %881 = vmatpush.msra.mxu0 0.0
    %882 = vmatpush.msra.mxu0 0.0
    %883 = vmatpush.msra.mxu0 0.0
    %884 = vmatpush.msra.mxu0 0.0
    %885 = vmatpush.msra.mxu0 0.0
    %886 = vmatpush.msra.mxu0 0.0
    %887 = vmatpush.msra.mxu0 0.0
    %888 = vmatpush.msra.mxu0 %v865
    %889 = vmatmul.f32.gmra.mxu0 %v868
    %v890 = vpop.f32.mrf.mxu0
    %v891 = vadd.f32 0.0, %v890
    %892 = vmatmul.f32.gmra.mxu0 %v871
    %v893 = vpop.f32.mrf.mxu0
    %v894 = vadd.f32 0.0, %v893
    %895 = vdwg.mxu0
    %v896 = vadd.f32 %v728, %v891
    %v897 = vadd.f32 %v729, %v894
    %v898 = vperm.slane %v64, 0
    %v899 = vadd.f32 %v896, %v898
    %v900 = vadd.f32 %v897, %v898
    %v901 = vadd.f32 %v71, %v899
    %v902 = vadd.f32 %v72, %v900
    %v903 = vsel %vm73, %v901, 0.0
    %904 = vadd.xlane.f32.xlu0 %v903
    %v905 = vpop.xlane.xlu0 %904
    %v906 = vsel %vm73, %v902, 0.0
    %907 = vadd.xlane.f32.xlu0 %v906
    %v908 = vpop.xlane.xlu0 %907
    %v909 = vmul.f32 %v905, %v86
    %v910 = vmul.f32 %v908, %v86
    %v911 = vsub.f32 %v901, %v909
    %v912 = vsub.f32 %v902, %v910
    %v913 = vmul.f32 %v911, %v911
    %v914 = vmul.f32 %v912, %v912
    %v915 = vsel %vm73, %v913, 0.0
    %916 = vadd.xlane.f32.xlu0 %v915
    %v917 = vpop.xlane.xlu0 %916
    %v918 = vsel %vm73, %v914, 0.0
    %919 = vadd.xlane.f32.xlu0 %v918
    %v920 = vpop.xlane.xlu0 %919
    %v921 = vmul.f32 %v917, %v86
    %v922 = vmul.f32 %v920, %v86
    %v923 = vadd.f32 %v921, 1e-05
    %v924 = vadd.f32 %v922, 1e-05
    %v925 = vrsqrt.pop %v923
    %v926 = vmul.f32 %v925, %v923
    %v927 = vmul.f32 %v926, %v925
    %v928 = vmul.f32 0.5, %v927
    %v929 = vsub.f32 1.5, %v928
    %v930 = vmul.f32 %v925, %v929
    %vm931 = vweird.f32 %v923
    %vm932 = vweird.f32 %v925
    %vm933 = vmor %vm931, %vm932
    %v934 = vsel %vm933, %v925, %v930
    %v935 = vrsqrt.pop %v924
    %v936 = vmul.f32 %v935, %v924
    %v937 = vmul.f32 %v936, %v935
    %v938 = vmul.f32 0.5, %v937
    %v939 = vsub.f32 1.5, %v938
    %v940 = vmul.f32 %v935, %v939
    %vm941 = vweird.f32 %v924
    %vm942 = vweird.f32 %v935
    %vm943 = vmor %vm941, %vm942
    %v944 = vsel %vm943, %v935, %v940
    %v945 = vmul.f32 %v911, %v934
    %v946 = vmul.f32 %v912, %v944
    %v947 = vperm.slane %v67, 0
    %v948 = vmul.f32 %v945, %v947
    %v949 = vmul.f32 %v946, %v947
    %v950 = vperm.slane %v68, 0
    %v951 = vadd.f32 %v948, %v950
    %v952 = vadd.f32 %v949, %v950
    %v954 = vperm.slane %v70, 0
    %v957 = vsel %vm73, %v951, 0
    %v960 = vsel %vm73, %v952, 0
    %962 = vmatpush.msra.mxu0 0.0
    %963 = vmatpush.msra.mxu0 0.0
    %964 = vmatpush.msra.mxu0 0.0
    %965 = vmatpush.msra.mxu0 0.0
    %966 = vmatpush.msra.mxu0 0.0
    %967 = vmatpush.msra.mxu0 0.0
    %968 = vmatpush.msra.mxu0 0.0
    %969 = vmatpush.msra.mxu0 0.0
    %970 = vmatpush.msra.mxu0 0.0
    %971 = vmatpush.msra.mxu0 0.0
    %972 = vmatpush.msra.mxu0 0.0
    %973 = vmatpush.msra.mxu0 0.0
    %974 = vmatpush.msra.mxu0 %v52
    %975 = vmatpush.msra.mxu0 %v51
    %976 = vmatpush.msra.mxu0 %v50
    %977 = vmatpush.msra.mxu0 %v49
    %978 = vmatmul.f32.gmra.mxu0 %v957
    %v979 = vpop.f32.mrf.mxu0
    %v980 = vadd.f32 %v954, %v979
    %981 = vmatmul.f32.gmra.mxu0 %v960
    %v982 = vpop.f32.mrf.mxu0
    %v983 = vadd.f32 %v954, %v982
    %984 = vdwg.mxu0
    %v985 = vmax.f32 %v980, 0.0
    %v986 = vmax.f32 %v983, 0.0
    %v987 = vperm.slane %v69, 0
    %vm988 = vcmask 523264
    %v990 = vsel %vm988, %v985, 0
    %v993 = vsel %vm988, %v986, 0
    %995 = vmatpush.msra.mxu0 0.0
    %996 = vmatpush.msra.mxu0 0.0
    %997 = vmatpush.msra.mxu0 0.0
    %998 = vmatpush.msra.mxu0 0.0
    %999 = vmatpush.msra.mxu0 0.0
    %1000 = vmatpush.msra.mxu0 0.0
    %1001 = vmatpush.msra.mxu0 0.0
    %1002 = vmatpush.msra.mxu0 0.0
    %1003 = vmatpush.msra.mxu0 %v60
    %1004 = vmatpush.msra.mxu0 %v59
    %1005 = vmatpush.msra.mxu0 %v58
    %1006 = vmatpush.msra.mxu0 %v57
    %1007 = vmatpush.msra.mxu0 %v56
    %1008 = vmatpush.msra.mxu0 %v55
    %1009 = vmatpush.msra.mxu0 %v54
    %1010 = vmatpush.msra.mxu0 %v53
    %1011 = vmatmul.f32.gmra.mxu0 %v990
    %v1012 = vpop.f32.mrf.mxu0
    %v1013 = vadd.f32 %v987, %v1012
    %1014 = vmatmul.f32.gmra.mxu0 %v993
    %v1015 = vpop.f32.mrf.mxu0
    %v1016 = vadd.f32 %v987, %v1015
    %1017 = vdwg.mxu0
    %v1018 = vadd.f32 %v901, %v1013
    %v1019 = vadd.f32 %v902, %v1016
    %v1020 = vsel %vm73, %v1018, 0.0
    %1021 = vadd.xlane.f32.xlu0 %v1020
    %v1022 = vpop.xlane.xlu0 %1021
    %v1023 = vsel %vm73, %v1019, 0.0
    %1024 = vadd.xlane.f32.xlu0 %v1023
    %v1025 = vpop.xlane.xlu0 %1024
    %v1026 = vmul.f32 %v1022, %v86
    %v1027 = vmul.f32 %v1025, %v86
    %v1028 = vsub.f32 %v1018, %v1026
    %v1029 = vsub.f32 %v1019, %v1027
    %v1030 = vmul.f32 %v1028, %v1028
    %v1031 = vmul.f32 %v1029, %v1029
    %v1032 = vsel %vm73, %v1030, 0.0
    %1033 = vadd.xlane.f32.xlu0 %v1032
    %v1034 = vpop.xlane.xlu0 %1033
    %v1035 = vsel %vm73, %v1031, 0.0
    %1036 = vadd.xlane.f32.xlu0 %v1035
    %v1037 = vpop.xlane.xlu0 %1036
    %v1038 = vmul.f32 %v1034, %v86
    %v1039 = vmul.f32 %v1037, %v86
    %v1040 = vadd.f32 %v1038, 1e-05
    %v1041 = vadd.f32 %v1039, 1e-05
    %v1042 = vrsqrt.pop %v1040
    %v1043 = vmul.f32 %v1042, %v1040
    %v1044 = vmul.f32 %v1043, %v1042
    %v1045 = vmul.f32 0.5, %v1044
    %v1046 = vsub.f32 1.5, %v1045
    %v1047 = vmul.f32 %v1042, %v1046
    %vm1048 = vweird.f32 %v1040
    %vm1049 = vweird.f32 %v1042
    %vm1050 = vmor %vm1048, %vm1049
    %v1051 = vsel %vm1050, %v1042, %v1047
    %v1052 = vrsqrt.pop %v1041
    %v1053 = vmul.f32 %v1052, %v1041
    %v1054 = vmul.f32 %v1053, %v1052
    %v1055 = vmul.f32 0.5, %v1054
    %v1056 = vsub.f32 1.5, %v1055
    %v1057 = vmul.f32 %v1052, %v1056
    %vm1058 = vweird.f32 %v1041
    %vm1059 = vweird.f32 %v1052
    %vm1060 = vmor %vm1058, %vm1059
    %v1061 = vsel %vm1060, %v1052, %v1057
    %v1062 = vmul.f32 %v1028, %v1051
    %v1063 = vmul.f32 %v1029, %v1061
    %v1064 = vmul.f32 %v1062, %v125
    %v1065 = vmul.f32 %v1063, %v125
    %v1066 = vadd.f32 %v1064, %v128
    %v1067 = vadd.f32 %v1065, %v128
    %v1069 = vsel %vm73, %v1066, 0
    %v1072 = vsel %vm73, %v1067, 0
    %1074 = vmatpush.msra.mxu0 0.0
    %1075 = vmatpush.msra.mxu0 0.0
    %1076 = vmatpush.msra.mxu0 0.0
    %1077 = vmatpush.msra.mxu0 0.0
    %1078 = vmatpush.msra.mxu0 0.0
    %1079 = vmatpush.msra.mxu0 0.0
    %1080 = vmatpush.msra.mxu0 0.0
    %1081 = vmatpush.msra.mxu0 0.0
    %1082 = vmatpush.msra.mxu0 0.0
    %1083 = vmatpush.msra.mxu0 0.0
    %1084 = vmatpush.msra.mxu0 0.0
    %1085 = vmatpush.msra.mxu0 0.0
    %1086 = vmatpush.msra.mxu0 %v48
    %1087 = vmatpush.msra.mxu0 %v47
    %1088 = vmatpush.msra.mxu0 %v46
    %1089 = vmatpush.msra.mxu0 %v45
    %1090 = vmatmul.f32.gmra.mxu0 %v1069
    %v1091 = vpop.f32.mrf.mxu0
    %v1092 = vadd.f32 %v131, %v1091
    %1093 = vmatmul.f32.gmra.mxu0 %v1072
    %v1094 = vpop.f32.mrf.mxu0
    %v1095 = vadd.f32 %v131, %v1094
    %1096 = vdwg.mxu0
    %1097 = vmatpush.msra.mxu0 0.0
    %1098 = vmatpush.msra.mxu0 0.0
    %1099 = vmatpush.msra.mxu0 0.0
    %1100 = vmatpush.msra.mxu0 0.0
    %1101 = vmatpush.msra.mxu0 0.0
    %1102 = vmatpush.msra.mxu0 0.0
    %1103 = vmatpush.msra.mxu0 0.0
    %1104 = vmatpush.msra.mxu0 0.0
    %1105 = vmatpush.msra.mxu0 0.0
    %1106 = vmatpush.msra.mxu0 0.0
    %1107 = vmatpush.msra.mxu0 0.0
    %1108 = vmatpush.msra.mxu0 0.0
    %1109 = vmatpush.msra.mxu0 %v173
    %1110 = vmatpush.msra.mxu0 %v171
    %1111 = vmatpush.msra.mxu0 %v169
    %1112 = vmatpush.msra.mxu0 %v167
    %1113 = vmatmul.f32.gmra.mxu0 %v1069
    %v1114 = vpop.f32.mrf.mxu0
    %v1115 = vadd.f32 %v161, %v1114
    %1116 = vmatmul.f32.gmra.mxu0 %v1072
    %v1117 = vpop.f32.mrf.mxu0
    %v1118 = vadd.f32 %v161, %v1117
    %1119 = vdwg.mxu0
    %1120 = vmatpush.msra.mxu0 0.0
    %1121 = vmatpush.msra.mxu0 0.0
    %1122 = vmatpush.msra.mxu0 0.0
    %1123 = vmatpush.msra.mxu0 0.0
    %1124 = vmatpush.msra.mxu0 0.0
    %1125 = vmatpush.msra.mxu0 0.0
    %1126 = vmatpush.msra.mxu0 0.0
    %1127 = vmatpush.msra.mxu0 0.0
    %1128 = vmatpush.msra.mxu0 0.0
    %1129 = vmatpush.msra.mxu0 0.0
    %1130 = vmatpush.msra.mxu0 0.0
    %1131 = vmatpush.msra.mxu0 0.0
    %1132 = vmatpush.msra.mxu0 %v209
    %1133 = vmatpush.msra.mxu0 %v207
    %1134 = vmatpush.msra.mxu0 %v205
    %1135 = vmatpush.msra.mxu0 %v203
    %1136 = vmatmul.f32.gmra.mxu0 %v1069
    %v1137 = vpop.f32.mrf.mxu0
    %v1138 = vadd.f32 %v201, %v1137
    %1139 = vmatmul.f32.gmra.mxu0 %v1072
    %v1140 = vpop.f32.mrf.mxu0
    %v1141 = vadd.f32 %v201, %v1140
    %1142 = vdwg.mxu0
    %v1144 = vsel %vm237, %v1092, 0
    %v1147 = vsel %vm237, %v1115, 0
    %1149 = vmatpush.xpose.msra.mxu0 0.0
    %1150 = vmatpush.xpose.msra.mxu0 0.0
    %1151 = vmatpush.xpose.msra.mxu0 0.0
    %1152 = vmatpush.xpose.msra.mxu0 0.0
    %1153 = vmatpush.xpose.msra.mxu0 0.0
    %1154 = vmatpush.xpose.msra.mxu0 0.0
    %1155 = vmatpush.xpose.msra.mxu0 0.0
    %1156 = vmatpush.xpose.msra.mxu0 0.0
    %1157 = vmatpush.xpose.msra.mxu0 0.0
    %1158 = vmatpush.xpose.msra.mxu0 0.0
    %1159 = vmatpush.xpose.msra.mxu0 0.0
    %1160 = vmatpush.xpose.msra.mxu0 0.0
    %1161 = vmatpush.xpose.msra.mxu0 0.0
    %1162 = vmatpush.xpose.msra.mxu0 0.0
    %1163 = vmatpush.xpose.msra.mxu0 0.0
    %1164 = vmatpush.xpose.msra.mxu0 %v1147
    %1165 = vmatmul.f32.gmra.mxu0 %v1144
    %v1166 = vpop.f32.mrf.mxu0
    %v1167 = vadd.f32 0.0, %v1166
    %1168 = vdwg.mxu0
    %v1170 = vsel %vm237, %v1095, 0
    %v1173 = vsel %vm237, %v1118, 0
    %1175 = vmatpush.xpose.msra.mxu0 0.0
    %1176 = vmatpush.xpose.msra.mxu0 0.0
    %1177 = vmatpush.xpose.msra.mxu0 0.0
    %1178 = vmatpush.xpose.msra.mxu0 0.0
    %1179 = vmatpush.xpose.msra.mxu0 0.0
    %1180 = vmatpush.xpose.msra.mxu0 0.0
    %1181 = vmatpush.xpose.msra.mxu0 0.0
    %1182 = vmatpush.xpose.msra.mxu0 0.0
    %1183 = vmatpush.xpose.msra.mxu0 0.0
    %1184 = vmatpush.xpose.msra.mxu0 0.0
    %1185 = vmatpush.xpose.msra.mxu0 0.0
    %1186 = vmatpush.xpose.msra.mxu0 0.0
    %1187 = vmatpush.xpose.msra.mxu0 0.0
    %1188 = vmatpush.xpose.msra.mxu0 0.0
    %1189 = vmatpush.xpose.msra.mxu0 0.0
    %1190 = vmatpush.xpose.msra.mxu0 %v1173
    %1191 = vmatmul.f32.gmra.mxu0 %v1170
    %v1192 = vpop.f32.mrf.mxu0
    %v1193 = vadd.f32 0.0, %v1192
    %1194 = vdwg.mxu0
    %v1195 = vmul.f32 %v1167, 0.35355338
    %v1196 = vmul.f32 %v1193, 0.35355338
    %v1197 = vadd.f32 %v1195, %v43
    %v1198 = vadd.f32 %v1196, %v44
    %v1199 = vsel %vm237, %v1197, -inf
    %1200 = vmax.xlane.f32.xlu0 %v1199
    %v1201 = vpop.xlane.xlu0 %1200
    %v1202 = vsel %vm237, %v1198, -inf
    %1203 = vmax.xlane.f32.xlu0 %v1202
    %v1204 = vpop.xlane.xlu0 %1203
    %v1205 = vsub.f32 %v1197, %v1201
    %v1206 = vsub.f32 %v1198, %v1204
    %v1207 = vmul.f32 %v1205, 1.442695
    %v1208 = vpow.pop %v1207
    %v1209 = vmul.f32 %v1206, 1.442695
    %v1210 = vpow.pop %v1209
    %v1211 = vsel %vm237, %v1208, 0.0
    %1212 = vadd.xlane.f32.xlu0 %v1211
    %v1213 = vpop.xlane.xlu0 %1212
    %v1214 = vsel %vm237, %v1210, 0.0
    %1215 = vadd.xlane.f32.xlu0 %v1214
    %v1216 = vpop.xlane.xlu0 %1215
    %v1217 = vrcp.pop %v1213
    %v1218 = vrcp.pop %v1216
    %v1219 = vmul.f32 %v1208, %v1217
    %v1220 = vmul.f32 %v1210, %v1218
    %v1222 = vsel %vm237, %v1219, 0
    %1224 = vmatpush.msra.mxu0 0.0
    %1225 = vmatpush.msra.mxu0 0.0
    %1226 = vmatpush.msra.mxu0 0.0
    %1227 = vmatpush.msra.mxu0 0.0
    %1228 = vmatpush.msra.mxu0 0.0
    %1229 = vmatpush.msra.mxu0 0.0
    %1230 = vmatpush.msra.mxu0 0.0
    %1231 = vmatpush.msra.mxu0 0.0
    %1232 = vmatpush.msra.mxu0 0.0
    %1233 = vmatpush.msra.mxu0 0.0
    %1234 = vmatpush.msra.mxu0 0.0
    %1235 = vmatpush.msra.mxu0 0.0
    %1236 = vmatpush.msra.mxu0 0.0
    %1237 = vmatpush.msra.mxu0 0.0
    %1238 = vmatpush.msra.mxu0 0.0
    %1239 = vmatpush.msra.mxu0 %v1138
    %1240 = vmatmul.f32.gmra.mxu0 %v1222
    %v1241 = vpop.f32.mrf.mxu0
    %v1242 = vadd.f32 0.0, %v1241
    %1243 = vdwg.mxu0
    %v1245 = vsel %vm237, %v1220, 0
    %1247 = vmatpush.msra.mxu0 0.0
    %1248 = vmatpush.msra.mxu0 0.0
    %1249 = vmatpush.msra.mxu0 0.0
    %1250 = vmatpush.msra.mxu0 0.0
    %1251 = vmatpush.msra.mxu0 0.0
    %1252 = vmatpush.msra.mxu0 0.0
    %1253 = vmatpush.msra.mxu0 0.0
    %1254 = vmatpush.msra.mxu0 0.0
    %1255 = vmatpush.msra.mxu0 0.0
    %1256 = vmatpush.msra.mxu0 0.0
    %1257 = vmatpush.msra.mxu0 0.0
    %1258 = vmatpush.msra.mxu0 0.0
    %1259 = vmatpush.msra.mxu0 0.0
    %1260 = vmatpush.msra.mxu0 0.0
    %1261 = vmatpush.msra.mxu0 0.0
    %1262 = vmatpush.msra.mxu0 %v1141
    %1263 = vmatmul.f32.gmra.mxu0 %v1245
    %v1264 = vpop.f32.mrf.mxu0
    %v1265 = vadd.f32 0.0, %v1264
    %1266 = vdwg.mxu0
    %1267 = vrot.lane.b32.xlu0 %v1092, 120
    %v1268 = vpop.permute.xlu0 %1267
    %1269 = vrot.lane.b32.xlu0 %v1115, 120
    %v1270 = vpop.permute.xlu0 %1269
    %v1271 = vsel %vm237, %v1268, 0
    %v1273 = vsel %vm237, %v1270, 0
    %1275 = vmatpush.xpose.msra.mxu0 0.0
    %1276 = vmatpush.xpose.msra.mxu0 0.0
    %1277 = vmatpush.xpose.msra.mxu0 0.0
    %1278 = vmatpush.xpose.msra.mxu0 0.0
    %1279 = vmatpush.xpose.msra.mxu0 0.0
    %1280 = vmatpush.xpose.msra.mxu0 0.0
    %1281 = vmatpush.xpose.msra.mxu0 0.0
    %1282 = vmatpush.xpose.msra.mxu0 0.0
    %1283 = vmatpush.xpose.msra.mxu0 0.0
    %1284 = vmatpush.xpose.msra.mxu0 0.0
    %1285 = vmatpush.xpose.msra.mxu0 0.0
    %1286 = vmatpush.xpose.msra.mxu0 0.0
    %1287 = vmatpush.xpose.msra.mxu0 0.0
    %1288 = vmatpush.xpose.msra.mxu0 0.0
    %1289 = vmatpush.xpose.msra.mxu0 0.0
    %1290 = vmatpush.xpose.msra.mxu0 %v1273
    %1291 = vmatmul.f32.gmra.mxu0 %v1271
    %v1292 = vpop.f32.mrf.mxu0
    %v1293 = vadd.f32 0.0, %v1292
    %1294 = vdwg.mxu0
    %1295 = vrot.lane.b32.xlu0 %v1095, 120
    %v1296 = vpop.permute.xlu0 %1295
    %1297 = vrot.lane.b32.xlu0 %v1118, 120
    %v1298 = vpop.permute.xlu0 %1297
    %v1299 = vsel %vm237, %v1296, 0
    %v1301 = vsel %vm237, %v1298, 0
    %1303 = vmatpush.xpose.msra.mxu0 0.0
    %1304 = vmatpush.xpose.msra.mxu0 0.0
    %1305 = vmatpush.xpose.msra.mxu0 0.0
    %1306 = vmatpush.xpose.msra.mxu0 0.0
    %1307 = vmatpush.xpose.msra.mxu0 0.0
    %1308 = vmatpush.xpose.msra.mxu0 0.0
    %1309 = vmatpush.xpose.msra.mxu0 0.0
    %1310 = vmatpush.xpose.msra.mxu0 0.0
    %1311 = vmatpush.xpose.msra.mxu0 0.0
    %1312 = vmatpush.xpose.msra.mxu0 0.0
    %1313 = vmatpush.xpose.msra.mxu0 0.0
    %1314 = vmatpush.xpose.msra.mxu0 0.0
    %1315 = vmatpush.xpose.msra.mxu0 0.0
    %1316 = vmatpush.xpose.msra.mxu0 0.0
    %1317 = vmatpush.xpose.msra.mxu0 0.0
    %1318 = vmatpush.xpose.msra.mxu0 %v1301
    %1319 = vmatmul.f32.gmra.mxu0 %v1299
    %v1320 = vpop.f32.mrf.mxu0
    %v1321 = vadd.f32 0.0, %v1320
    %1322 = vdwg.mxu0
    %v1323 = vmul.f32 %v1293, 0.35355338
    %v1324 = vmul.f32 %v1321, 0.35355338
    %v1325 = vadd.f32 %v1323, %v43
    %v1326 = vadd.f32 %v1324, %v44
    %v1327 = vsel %vm237, %v1325, -inf
    %1328 = vmax.xlane.f32.xlu0 %v1327
    %v1329 = vpop.xlane.xlu0 %1328
    %v1330 = vsel %vm237, %v1326, -inf
    %1331 = vmax.xlane.f32.xlu0 %v1330
    %v1332 = vpop.xlane.xlu0 %1331
    %v1333 = vsub.f32 %v1325, %v1329
    %v1334 = vsub.f32 %v1326, %v1332
    %v1335 = vmul.f32 %v1333, 1.442695
    %v1336 = vpow.pop %v1335
    %v1337 = vmul.f32 %v1334, 1.442695
    %v1338 = vpow.pop %v1337
    %v1339 = vsel %vm237, %v1336, 0.0
    %1340 = vadd.xlane.f32.xlu0 %v1339
    %v1341 = vpop.xlane.xlu0 %1340
    %v1342 = vsel %vm237, %v1338, 0.0
    %1343 = vadd.xlane.f32.xlu0 %v1342
    %v1344 = vpop.xlane.xlu0 %1343
    %v1345 = vrcp.pop %v1341
    %v1346 = vrcp.pop %v1344
    %v1347 = vmul.f32 %v1336, %v1345
    %v1348 = vmul.f32 %v1338, %v1346
    %1350 = vrot.lane.b32.xlu0 %v1138, 120
    %v1351 = vpop.permute.xlu0 %1350
    %v1354 = vsel %vm237, %v1347, 0
    %1356 = vmatpush.msra.mxu0 0.0
    %1357 = vmatpush.msra.mxu0 0.0
    %1358 = vmatpush.msra.mxu0 0.0
    %1359 = vmatpush.msra.mxu0 0.0
    %1360 = vmatpush.msra.mxu0 0.0
    %1361 = vmatpush.msra.mxu0 0.0
    %1362 = vmatpush.msra.mxu0 0.0
    %1363 = vmatpush.msra.mxu0 0.0
    %1364 = vmatpush.msra.mxu0 0.0
    %1365 = vmatpush.msra.mxu0 0.0
    %1366 = vmatpush.msra.mxu0 0.0
    %1367 = vmatpush.msra.mxu0 0.0
    %1368 = vmatpush.msra.mxu0 0.0
    %1369 = vmatpush.msra.mxu0 0.0
    %1370 = vmatpush.msra.mxu0 0.0
    %1371 = vmatpush.msra.mxu0 %v1351
    %1372 = vmatmul.f32.gmra.mxu0 %v1354
    %v1373 = vpop.f32.mrf.mxu0
    %v1374 = vadd.f32 0.0, %v1373
    %1375 = vdwg.mxu0
    %1377 = vrot.lane.b32.xlu0 %v1141, 120
    %v1378 = vpop.permute.xlu0 %1377
    %v1381 = vsel %vm237, %v1348, 0
    %1383 = vmatpush.msra.mxu0 0.0
    %1384 = vmatpush.msra.mxu0 0.0
    %1385 = vmatpush.msra.mxu0 0.0
    %1386 = vmatpush.msra.mxu0 0.0
    %1387 = vmatpush.msra.mxu0 0.0
    %1388 = vmatpush.msra.mxu0 0.0
    %1389 = vmatpush.msra.mxu0 0.0
    %1390 = vmatpush.msra.mxu0 0.0
    %1391 = vmatpush.msra.mxu0 0.0
    %1392 = vmatpush.msra.mxu0 0.0
    %1393 = vmatpush.msra.mxu0 0.0
    %1394 = vmatpush.msra.mxu0 0.0
    %1395 = vmatpush.msra.mxu0 0.0
    %1396 = vmatpush.msra.mxu0 0.0
    %1397 = vmatpush.msra.mxu0 0.0
    %1398 = vmatpush.msra.mxu0 %v1378
    %1399 = vmatmul.f32.gmra.mxu0 %v1381
    %v1400 = vpop.f32.mrf.mxu0
    %v1401 = vadd.f32 0.0, %v1400
    %1402 = vdwg.mxu0
    %v1404 = vsel %vm237, %v1374, 0
    %v1407 = vsel %vm237, %v1401, 0
    %1409 = vmatpush.msra.mxu0 0.0
    %1410 = vmatpush.msra.mxu0 0.0
    %1411 = vmatpush.msra.mxu0 0.0
    %1412 = vmatpush.msra.mxu0 0.0
    %1413 = vmatpush.msra.mxu0 0.0
    %1414 = vmatpush.msra.mxu0 0.0
    %1415 = vmatpush.msra.mxu0 0.0
    %1416 = vmatpush.msra.mxu0 0.0
    %1417 = vmatpush.msra.mxu0 0.0
    %1418 = vmatpush.msra.mxu0 0.0
    %1419 = vmatpush.msra.mxu0 0.0
    %1420 = vmatpush.msra.mxu0 0.0
    %1421 = vmatpush.msra.mxu0 0.0
    %1422 = vmatpush.msra.mxu0 0.0
    %1423 = vmatpush.msra.mxu0 0.0
    %1424 = vmatpush.msra.mxu0 %v499
    %1425 = vmatmul.f32.gmra.mxu0 %v1404
    %v1426 = vpop.f32.mrf.mxu0
    %v1427 = vadd.f32 0.0, %v1426
    %1428 = vmatmul.f32.gmra.mxu0 %v1407
    %v1429 = vpop.f32.mrf.mxu0
    %v1430 = vadd.f32 0.0, %v1429
    %1431 = vdwg.mxu0
    %v1433 = vsel %vm237, %v1242, 0
    %v1436 = vsel %vm237, %v1265, 0
    %1438 = vmatpush.msra.mxu0 0.0
    %1439 = vmatpush.msra.mxu0 0.0
    %1440 = vmatpush.msra.mxu0 0.0
    %1441 = vmatpush.msra.mxu0 0.0
    %1442 = vmatpush.msra.mxu0 0.0
    %1443 = vmatpush.msra.mxu0 0.0
    %1444 = vmatpush.msra.mxu0 0.0
    %1445 = vmatpush.msra.mxu0 0.0
    %1446 = vmatpush.msra.mxu0 0.0
    %1447 = vmatpush.msra.mxu0 0.0
    %1448 = vmatpush.msra.mxu0 0.0
    %1449 = vmatpush.msra.mxu0 0.0
    %1450 = vmatpush.msra.mxu0 0.0
    %1451 = vmatpush.msra.mxu0 0.0
    %1452 = vmatpush.msra.mxu0 0.0
    %1453 = vmatpush.msra.mxu0 %v531
    %1454 = vmatmul.f32.gmra.mxu0 %v1433
    %v1455 = vpop.f32.mrf.mxu0
    %v1456 = vadd.f32 %v1427, %v1455
    %1457 = vmatmul.f32.gmra.mxu0 %v1436
    %v1458 = vpop.f32.mrf.mxu0
    %v1459 = vadd.f32 %v1430, %v1458
    %1460 = vdwg.mxu0
    %1461 = vrot.lane.b32.xlu0 %v1092, 112
    %v1462 = vpop.permute.xlu0 %1461
    %1463 = vrot.lane.b32.xlu0 %v1115, 112
    %v1464 = vpop.permute.xlu0 %1463
    %v1465 = vsel %vm237, %v1462, 0
    %v1467 = vsel %vm237, %v1464, 0
    %1469 = vmatpush.xpose.msra.mxu0 0.0
    %1470 = vmatpush.xpose.msra.mxu0 0.0
    %1471 = vmatpush.xpose.msra.mxu0 0.0
    %1472 = vmatpush.xpose.msra.mxu0 0.0
    %1473 = vmatpush.xpose.msra.mxu0 0.0
    %1474 = vmatpush.xpose.msra.mxu0 0.0
    %1475 = vmatpush.xpose.msra.mxu0 0.0
    %1476 = vmatpush.xpose.msra.mxu0 0.0
    %1477 = vmatpush.xpose.msra.mxu0 0.0
    %1478 = vmatpush.xpose.msra.mxu0 0.0
    %1479 = vmatpush.xpose.msra.mxu0 0.0
    %1480 = vmatpush.xpose.msra.mxu0 0.0
    %1481 = vmatpush.xpose.msra.mxu0 0.0
    %1482 = vmatpush.xpose.msra.mxu0 0.0
    %1483 = vmatpush.xpose.msra.mxu0 0.0
    %1484 = vmatpush.xpose.msra.mxu0 %v1467
    %1485 = vmatmul.f32.gmra.mxu0 %v1465
    %v1486 = vpop.f32.mrf.mxu0
    %v1487 = vadd.f32 0.0, %v1486
    %1488 = vdwg.mxu0
    %1489 = vrot.lane.b32.xlu0 %v1095, 112
    %v1490 = vpop.permute.xlu0 %1489
    %1491 = vrot.lane.b32.xlu0 %v1118, 112
    %v1492 = vpop.permute.xlu0 %1491
    %v1493 = vsel %vm237, %v1490, 0
    %v1495 = vsel %vm237, %v1492, 0
    %1497 = vmatpush.xpose.msra.mxu0 0.0
    %1498 = vmatpush.xpose.msra.mxu0 0.0
    %1499 = vmatpush.xpose.msra.mxu0 0.0
    %1500 = vmatpush.xpose.msra.mxu0 0.0
    %1501 = vmatpush.xpose.msra.mxu0 0.0
    %1502 = vmatpush.xpose.msra.mxu0 0.0
    %1503 = vmatpush.xpose.msra.mxu0 0.0
    %1504 = vmatpush.xpose.msra.mxu0 0.0
    %1505 = vmatpush.xpose.msra.mxu0 0.0
    %1506 = vmatpush.xpose.msra.mxu0 0.0
    %1507 = vmatpush.xpose.msra.mxu0 0.0
    %1508 = vmatpush.xpose.msra.mxu0 0.0
    %1509 = vmatpush.xpose.msra.mxu0 0.0
    %1510 = vmatpush.xpose.msra.mxu0 0.0
    %1511 = vmatpush.xpose.msra.mxu0 0.0
    %1512 = vmatpush.xpose.msra.mxu0 %v1495
    %1513 = vmatmul.f32.gmra.mxu0 %v1493
    %v1514 = vpop.f32.mrf.mxu0
    %v1515 = vadd.f32 0.0, %v1514
    %1516 = vdwg.mxu0
    %v1517 = vmul.f32 %v1487, 0.35355338
    %v1518 = vmul.f32 %v1515, 0.35355338
    %v1519 = vadd.f32 %v1517, %v43
    %v1520 = vadd.f32 %v1518, %v44
    %v1521 = vsel %vm237, %v1519, -inf
    %1522 = vmax.xlane.f32.xlu0 %v1521
    %v1523 = vpop.xlane.xlu0 %1522
    %v1524 = vsel %vm237, %v1520, -inf
    %1525 = vmax.xlane.f32.xlu0 %v1524
    %v1526 = vpop.xlane.xlu0 %1525
    %v1527 = vsub.f32 %v1519, %v1523
    %v1528 = vsub.f32 %v1520, %v1526
    %v1529 = vmul.f32 %v1527, 1.442695
    %v1530 = vpow.pop %v1529
    %v1531 = vmul.f32 %v1528, 1.442695
    %v1532 = vpow.pop %v1531
    %v1533 = vsel %vm237, %v1530, 0.0
    %1534 = vadd.xlane.f32.xlu0 %v1533
    %v1535 = vpop.xlane.xlu0 %1534
    %v1536 = vsel %vm237, %v1532, 0.0
    %1537 = vadd.xlane.f32.xlu0 %v1536
    %v1538 = vpop.xlane.xlu0 %1537
    %v1539 = vrcp.pop %v1535
    %v1540 = vrcp.pop %v1538
    %v1541 = vmul.f32 %v1530, %v1539
    %v1542 = vmul.f32 %v1532, %v1540
    %1543 = vrot.lane.b32.xlu0 %v1138, 112
    %v1544 = vpop.permute.xlu0 %1543
    %v1547 = vsel %vm237, %v1541, 0
    %1549 = vmatpush.msra.mxu0 0.0
    %1550 = vmatpush.msra.mxu0 0.0
    %1551 = vmatpush.msra.mxu0 0.0
    %1552 = vmatpush.msra.mxu0 0.0
    %1553 = vmatpush.msra.mxu0 0.0
    %1554 = vmatpush.msra.mxu0 0.0
    %1555 = vmatpush.msra.mxu0 0.0
    %1556 = vmatpush.msra.mxu0 0.0
    %1557 = vmatpush.msra.mxu0 0.0
    %1558 = vmatpush.msra.mxu0 0.0
    %1559 = vmatpush.msra.mxu0 0.0
    %1560 = vmatpush.msra.mxu0 0.0
    %1561 = vmatpush.msra.mxu0 0.0
    %1562 = vmatpush.msra.mxu0 0.0
    %1563 = vmatpush.msra.mxu0 0.0
    %1564 = vmatpush.msra.mxu0 %v1544
    %1565 = vmatmul.f32.gmra.mxu0 %v1547
    %v1566 = vpop.f32.mrf.mxu0
    %v1567 = vadd.f32 0.0, %v1566
    %1568 = vdwg.mxu0
    %1569 = vrot.lane.b32.xlu0 %v1141, 112
    %v1570 = vpop.permute.xlu0 %1569
    %v1573 = vsel %vm237, %v1542, 0
    %1575 = vmatpush.msra.mxu0 0.0
    %1576 = vmatpush.msra.mxu0 0.0
    %1577 = vmatpush.msra.mxu0 0.0
    %1578 = vmatpush.msra.mxu0 0.0
    %1579 = vmatpush.msra.mxu0 0.0
    %1580 = vmatpush.msra.mxu0 0.0
    %1581 = vmatpush.msra.mxu0 0.0
    %1582 = vmatpush.msra.mxu0 0.0
    %1583 = vmatpush.msra.mxu0 0.0
    %1584 = vmatpush.msra.mxu0 0.0
    %1585 = vmatpush.msra.mxu0 0.0
    %1586 = vmatpush.msra.mxu0 0.0
    %1587 = vmatpush.msra.mxu0 0.0
    %1588 = vmatpush.msra.mxu0 0.0
    %1589 = vmatpush.msra.mxu0 0.0
    %1590 = vmatpush.msra.mxu0 %v1570
    %1591 = vmatmul.f32.gmra.mxu0 %v1573
    %v1592 = vpop.f32.mrf.mxu0
    %v1593 = vadd.f32 0.0, %v1592
    %1594 = vdwg.mxu0
    %v1596 = vsel %vm237, %v1567, 0
    %v1599 = vsel %vm237, %v1593, 0
    %1601 = vmatpush.msra.mxu0 0.0
    %1602 = vmatpush.msra.mxu0 0.0
    %1603 = vmatpush.msra.mxu0 0.0
    %1604 = vmatpush.msra.mxu0 0.0
    %1605 = vmatpush.msra.mxu0 0.0
    %1606 = vmatpush.msra.mxu0 0.0
    %1607 = vmatpush.msra.mxu0 0.0
    %1608 = vmatpush.msra.mxu0 0.0
    %1609 = vmatpush.msra.mxu0 0.0
    %1610 = vmatpush.msra.mxu0 0.0
    %1611 = vmatpush.msra.mxu0 0.0
    %1612 = vmatpush.msra.mxu0 0.0
    %1613 = vmatpush.msra.mxu0 0.0
    %1614 = vmatpush.msra.mxu0 0.0
    %1615 = vmatpush.msra.mxu0 0.0
    %1616 = vmatpush.msra.mxu0 %v697
    %1617 = vmatmul.f32.gmra.mxu0 %v1596
    %v1618 = vpop.f32.mrf.mxu0
    %v1619 = vadd.f32 0.0, %v1618
    %1620 = vmatmul.f32.gmra.mxu0 %v1599
    %v1621 = vpop.f32.mrf.mxu0
    %v1622 = vadd.f32 0.0, %v1621
    %1623 = vdwg.mxu0
    %v1624 = vadd.f32 %v1456, %v1619
    %v1625 = vadd.f32 %v1459, %v1622
    %1626 = vrot.lane.b32.xlu0 %v1092, 104
    %v1627 = vpop.permute.xlu0 %1626
    %1628 = vrot.lane.b32.xlu0 %v1115, 104
    %v1629 = vpop.permute.xlu0 %1628
    %v1630 = vsel %vm237, %v1627, 0
    %v1632 = vsel %vm237, %v1629, 0
    %1634 = vmatpush.xpose.msra.mxu0 0.0
    %1635 = vmatpush.xpose.msra.mxu0 0.0
    %1636 = vmatpush.xpose.msra.mxu0 0.0
    %1637 = vmatpush.xpose.msra.mxu0 0.0
    %1638 = vmatpush.xpose.msra.mxu0 0.0
    %1639 = vmatpush.xpose.msra.mxu0 0.0
    %1640 = vmatpush.xpose.msra.mxu0 0.0
    %1641 = vmatpush.xpose.msra.mxu0 0.0
    %1642 = vmatpush.xpose.msra.mxu0 0.0
    %1643 = vmatpush.xpose.msra.mxu0 0.0
    %1644 = vmatpush.xpose.msra.mxu0 0.0
    %1645 = vmatpush.xpose.msra.mxu0 0.0
    %1646 = vmatpush.xpose.msra.mxu0 0.0
    %1647 = vmatpush.xpose.msra.mxu0 0.0
    %1648 = vmatpush.xpose.msra.mxu0 0.0
    %1649 = vmatpush.xpose.msra.mxu0 %v1632
    %1650 = vmatmul.f32.gmra.mxu0 %v1630
    %v1651 = vpop.f32.mrf.mxu0
    %v1652 = vadd.f32 0.0, %v1651
    %1653 = vdwg.mxu0
    %1654 = vrot.lane.b32.xlu0 %v1095, 104
    %v1655 = vpop.permute.xlu0 %1654
    %1656 = vrot.lane.b32.xlu0 %v1118, 104
    %v1657 = vpop.permute.xlu0 %1656
    %v1658 = vsel %vm237, %v1655, 0
    %v1660 = vsel %vm237, %v1657, 0
    %1662 = vmatpush.xpose.msra.mxu0 0.0
    %1663 = vmatpush.xpose.msra.mxu0 0.0
    %1664 = vmatpush.xpose.msra.mxu0 0.0
    %1665 = vmatpush.xpose.msra.mxu0 0.0
    %1666 = vmatpush.xpose.msra.mxu0 0.0
    %1667 = vmatpush.xpose.msra.mxu0 0.0
    %1668 = vmatpush.xpose.msra.mxu0 0.0
    %1669 = vmatpush.xpose.msra.mxu0 0.0
    %1670 = vmatpush.xpose.msra.mxu0 0.0
    %1671 = vmatpush.xpose.msra.mxu0 0.0
    %1672 = vmatpush.xpose.msra.mxu0 0.0
    %1673 = vmatpush.xpose.msra.mxu0 0.0
    %1674 = vmatpush.xpose.msra.mxu0 0.0
    %1675 = vmatpush.xpose.msra.mxu0 0.0
    %1676 = vmatpush.xpose.msra.mxu0 0.0
    %1677 = vmatpush.xpose.msra.mxu0 %v1660
    %1678 = vmatmul.f32.gmra.mxu0 %v1658
    %v1679 = vpop.f32.mrf.mxu0
    %v1680 = vadd.f32 0.0, %v1679
    %1681 = vdwg.mxu0
    %v1682 = vmul.f32 %v1652, 0.35355338
    %v1683 = vmul.f32 %v1680, 0.35355338
    %v1684 = vadd.f32 %v1682, %v43
    %v1685 = vadd.f32 %v1683, %v44
    %v1686 = vsel %vm237, %v1684, -inf
    %1687 = vmax.xlane.f32.xlu0 %v1686
    %v1688 = vpop.xlane.xlu0 %1687
    %v1689 = vsel %vm237, %v1685, -inf
    %1690 = vmax.xlane.f32.xlu0 %v1689
    %v1691 = vpop.xlane.xlu0 %1690
    %v1692 = vsub.f32 %v1684, %v1688
    %v1693 = vsub.f32 %v1685, %v1691
    %v1694 = vmul.f32 %v1692, 1.442695
    %v1695 = vpow.pop %v1694
    %v1696 = vmul.f32 %v1693, 1.442695
    %v1697 = vpow.pop %v1696
    %v1698 = vsel %vm237, %v1695, 0.0
    %1699 = vadd.xlane.f32.xlu0 %v1698
    %v1700 = vpop.xlane.xlu0 %1699
    %v1701 = vsel %vm237, %v1697, 0.0
    %1702 = vadd.xlane.f32.xlu0 %v1701
    %v1703 = vpop.xlane.xlu0 %1702
    %v1704 = vrcp.pop %v1700
    %v1705 = vrcp.pop %v1703
    %v1706 = vmul.f32 %v1695, %v1704
    %v1707 = vmul.f32 %v1697, %v1705
    %1708 = vrot.lane.b32.xlu0 %v1138, 104
    %v1709 = vpop.permute.xlu0 %1708
    %v1712 = vsel %vm237, %v1706, 0
    %1714 = vmatpush.msra.mxu0 0.0
    %1715 = vmatpush.msra.mxu0 0.0
    %1716 = vmatpush.msra.mxu0 0.0
    %1717 = vmatpush.msra.mxu0 0.0
    %1718 = vmatpush.msra.mxu0 0.0
    %1719 = vmatpush.msra.mxu0 0.0
    %1720 = vmatpush.msra.mxu0 0.0
    %1721 = vmatpush.msra.mxu0 0.0
    %1722 = vmatpush.msra.mxu0 0.0
    %1723 = vmatpush.msra.mxu0 0.0
    %1724 = vmatpush.msra.mxu0 0.0
    %1725 = vmatpush.msra.mxu0 0.0
    %1726 = vmatpush.msra.mxu0 0.0
    %1727 = vmatpush.msra.mxu0 0.0
    %1728 = vmatpush.msra.mxu0 0.0
    %1729 = vmatpush.msra.mxu0 %v1709
    %1730 = vmatmul.f32.gmra.mxu0 %v1712
    %v1731 = vpop.f32.mrf.mxu0
    %v1732 = vadd.f32 0.0, %v1731
    %1733 = vdwg.mxu0
    %1734 = vrot.lane.b32.xlu0 %v1141, 104
    %v1735 = vpop.permute.xlu0 %1734
    %v1738 = vsel %vm237, %v1707, 0
    %1740 = vmatpush.msra.mxu0 0.0
    %1741 = vmatpush.msra.mxu0 0.0
    %1742 = vmatpush.msra.mxu0 0.0
    %1743 = vmatpush.msra.mxu0 0.0
    %1744 = vmatpush.msra.mxu0 0.0
    %1745 = vmatpush.msra.mxu0 0.0
    %1746 = vmatpush.msra.mxu0 0.0
    %1747 = vmatpush.msra.mxu0 0.0
    %1748 = vmatpush.msra.mxu0 0.0
    %1749 = vmatpush.msra.mxu0 0.0
    %1750 = vmatpush.msra.mxu0 0.0
    %1751 = vmatpush.msra.mxu0 0.0
    %1752 = vmatpush.msra.mxu0 0.0
    %1753 = vmatpush.msra.mxu0 0.0
    %1754 = vmatpush.msra.mxu0 0.0
    %1755 = vmatpush.msra.mxu0 %v1735
    %1756 = vmatmul.f32.gmra.mxu0 %v1738
    %v1757 = vpop.f32.mrf.mxu0
    %v1758 = vadd.f32 0.0, %v1757
    %1759 = vdwg.mxu0
    %v1761 = vsel %vm237, %v1732, 0
    %v1764 = vsel %vm237, %v1758, 0
    %1766 = vmatpush.msra.mxu0 0.0
    %1767 = vmatpush.msra.mxu0 0.0
    %1768 = vmatpush.msra.mxu0 0.0
    %1769 = vmatpush.msra.mxu0 0.0
    %1770 = vmatpush.msra.mxu0 0.0
    %1771 = vmatpush.msra.mxu0 0.0
    %1772 = vmatpush.msra.mxu0 0.0
    %1773 = vmatpush.msra.mxu0 0.0
    %1774 = vmatpush.msra.mxu0 0.0
    %1775 = vmatpush.msra.mxu0 0.0
    %1776 = vmatpush.msra.mxu0 0.0
    %1777 = vmatpush.msra.mxu0 0.0
    %1778 = vmatpush.msra.mxu0 0.0
    %1779 = vmatpush.msra.mxu0 0.0
    %1780 = vmatpush.msra.mxu0 0.0
    %1781 = vmatpush.msra.mxu0 %v865
    %1782 = vmatmul.f32.gmra.mxu0 %v1761
    %v1783 = vpop.f32.mrf.mxu0
    %v1784 = vadd.f32 0.0, %v1783
    %1785 = vmatmul.f32.gmra.mxu0 %v1764
    %v1786 = vpop.f32.mrf.mxu0
    %v1787 = vadd.f32 0.0, %v1786
    %1788 = vdwg.mxu0
    %v1789 = vadd.f32 %v1624, %v1784
    %v1790 = vadd.f32 %v1625, %v1787
    %v1791 = vadd.f32 %v1789, %v898
    %v1792 = vadd.f32 %v1790, %v898
    %v1793 = vadd.f32 %v1018, %v1791
    %v1794 = vadd.f32 %v1019, %v1792
    %v1795 = vsel %vm73, %v1793, 0.0
    %1796 = vadd.xlane.f32.xlu0 %v1795
    %v1797 = vpop.xlane.xlu0 %1796
    %v1798 = vsel %vm73, %v1794, 0.0
    %1799 = vadd.xlane.f32.xlu0 %v1798
    %v1800 = vpop.xlane.xlu0 %1799
    %v1801 = vmul.f32 %v1797, %v86
    %v1802 = vmul.f32 %v1800, %v86
    %v1803 = vsub.f32 %v1793, %v1801
    %v1804 = vsub.f32 %v1794, %v1802
    %v1805 = vmul.f32 %v1803, %v1803
    %v1806 = vmul.f32 %v1804, %v1804
    %v1807 = vsel %vm73, %v1805, 0.0
    %1808 = vadd.xlane.f32.xlu0 %v1807
    %v1809 = vpop.xlane.xlu0 %1808
    %v1810 = vsel %vm73, %v1806, 0.0
    %1811 = vadd.xlane.f32.xlu0 %v1810
    %v1812 = vpop.xlane.xlu0 %1811
    %v1813 = vmul.f32 %v1809, %v86
    %v1814 = vmul.f32 %v1812, %v86
    %v1815 = vadd.f32 %v1813, 1e-05
    %v1816 = vadd.f32 %v1814, 1e-05
    %v1817 = vrsqrt.pop %v1815
    %v1818 = vmul.f32 %v1817, %v1815
    %v1819 = vmul.f32 %v1818, %v1817
    %v1820 = vmul.f32 0.5, %v1819
    %v1821 = vsub.f32 1.5, %v1820
    %v1822 = vmul.f32 %v1817, %v1821
    %vm1823 = vweird.f32 %v1815
    %vm1824 = vweird.f32 %v1817
    %vm1825 = vmor %vm1823, %vm1824
    %v1826 = vsel %vm1825, %v1817, %v1822
    %v1827 = vrsqrt.pop %v1816
    %v1828 = vmul.f32 %v1827, %v1816
    %v1829 = vmul.f32 %v1828, %v1827
    %v1830 = vmul.f32 0.5, %v1829
    %v1831 = vsub.f32 1.5, %v1830
    %v1832 = vmul.f32 %v1827, %v1831
    %vm1833 = vweird.f32 %v1816
    %vm1834 = vweird.f32 %v1827
    %vm1835 = vmor %vm1833, %vm1834
    %v1836 = vsel %vm1835, %v1827, %v1832
    %v1837 = vmul.f32 %v1803, %v1826
    %v1838 = vmul.f32 %v1804, %v1836
    %v1839 = vmul.f32 %v1837, %v947
    %v1840 = vmul.f32 %v1838, %v947
    %v1841 = vadd.f32 %v1839, %v950
    %v1842 = vadd.f32 %v1840, %v950
    %v1844 = vsel %vm73, %v1841, 0
    %v1847 = vsel %vm73, %v1842, 0
    %1849 = vmatpush.msra.mxu0 0.0
    %1850 = vmatpush.msra.mxu0 0.0
    %1851 = vmatpush.msra.mxu0 0.0
    %1852 = vmatpush.msra.mxu0 0.0
    %1853 = vmatpush.msra.mxu0 0.0
    %1854 = vmatpush.msra.mxu0 0.0
    %1855 = vmatpush.msra.mxu0 0.0
    %1856 = vmatpush.msra.mxu0 0.0
    %1857 = vmatpush.msra.mxu0 0.0
    %1858 = vmatpush.msra.mxu0 0.0
    %1859 = vmatpush.msra.mxu0 0.0
    %1860 = vmatpush.msra.mxu0 0.0
    %1861 = vmatpush.msra.mxu0 %v52
    %1862 = vmatpush.msra.mxu0 %v51
    %1863 = vmatpush.msra.mxu0 %v50
    %1864 = vmatpush.msra.mxu0 %v49
    %1865 = vmatmul.f32.gmra.mxu0 %v1844
    %v1866 = vpop.f32.mrf.mxu0
    %v1867 = vadd.f32 %v954, %v1866
    %1868 = vmatmul.f32.gmra.mxu0 %v1847
    %v1869 = vpop.f32.mrf.mxu0
    %v1870 = vadd.f32 %v954, %v1869
    %1871 = vdwg.mxu0
    %v1872 = vmax.f32 %v1867, 0.0
    %v1873 = vmax.f32 %v1870, 0.0
    %v1875 = vsel %vm988, %v1872, 0
    %v1878 = vsel %vm988, %v1873, 0
    %1880 = vmatpush.msra.mxu0 0.0
    %1881 = vmatpush.msra.mxu0 0.0
    %1882 = vmatpush.msra.mxu0 0.0
    %1883 = vmatpush.msra.mxu0 0.0
    %1884 = vmatpush.msra.mxu0 0.0
    %1885 = vmatpush.msra.mxu0 0.0
    %1886 = vmatpush.msra.mxu0 0.0
    %1887 = vmatpush.msra.mxu0 0.0
    %1888 = vmatpush.msra.mxu0 %v60
    %1889 = vmatpush.msra.mxu0 %v59
    %1890 = vmatpush.msra.mxu0 %v58
    %1891 = vmatpush.msra.mxu0 %v57
    %1892 = vmatpush.msra.mxu0 %v56
    %1893 = vmatpush.msra.mxu0 %v55
    %1894 = vmatpush.msra.mxu0 %v54
    %1895 = vmatpush.msra.mxu0 %v53
    %1896 = vmatmul.f32.gmra.mxu0 %v1875
    %v1897 = vpop.f32.mrf.mxu0
    %v1898 = vadd.f32 %v987, %v1897
    %1899 = vmatmul.f32.gmra.mxu0 %v1878
    %v1900 = vpop.f32.mrf.mxu0
    %v1901 = vadd.f32 %v987, %v1900
    %1902 = vdwg.mxu0
    %v1903 = vadd.f32 %v1793, %v1898
    %v1904 = vadd.f32 %v1794, %v1901
    %1905 = vst.msk [vmem:[#allocation5] sm:$0xff] %vm73, %v1903
    %1906 = vst.msk [vmem:[#allocation5 + $0x8] sm:$0xff] %vm73, %v1904
    // Predicated region
    $region34: #{tpu_custom_call.1} parent=1 // pred_check
      _
    $region35: #{tpu_custom_call.1} parent=1 // pred_check_branch
      %1908 = sbr.rel (0) target = $region37
    $region36: #{tpu_custom_call.1} parent=1 // pred_region
      %1910 = vsyncadd [#allocation4], 0
      %s1911 = sshll.u32 [#allocation5], 4
      %s1912 = int_to_ptr.vmem [resolvable:$true] %s1911
      %s1913 = sshll.u32 %s7, 4
      %s1914 = int_to_ptr.hbm [resolvable:$true] %s1913
      %1919 = dma.vmem_to_hbm [thread:$0]  %s1912, 256, %s1914, [#allocation4], 128, 128, 8
    $region37: #{tpu_custom_call.1} parent=1 // pred_fallthru
      _
    // Predicated region
    $region38: #{tpu_custom_call.1} parent=1 // pred_check
      _
    $region39: #{tpu_custom_call.1} parent=1 // pred_check_branch
      %1921 = sbr.rel (0) target = $region41
    $region40: #{tpu_custom_call.1} parent=1 // pred_region
      %1923 = dma.done [#allocation4], 256
    $region41: #{tpu_custom_call.1} parent=1 // pred_fallthru
      _
    %1924 = vsyncpa [#allocation3], 1
    %1925 = vsyncpa [#allocation4], 1

</llo_original>
